<compile_context>
chip_gen: v5e
topology: v5e:2x2
jax: 0.10.0
libtpu: 0.0.40
codegen_flags: <defaults>
</compile_context>

<pallas_src>
import functools

import jax
import jax.numpy as jnp
from jax.experimental import pallas as pl
from jax.experimental.pallas import tpu as pltpu


# --------------------------------------------------------------------------- #
# Kernel 1: packed-tap matmul (the ConvTranspose3d itself)
# --------------------------------------------------------------------------- #
def _tap_matmul_kernel(x_ref, w_ref, b_ref, y_ref):
    # x_ref: (Cin, ts)      -- x2[n], spatial (d,h,w) flattened on lanes
    # w_ref: (4*Cout, Cin)  -- rows packed as (kh, kw, co)
    # b_ref: (4*Cout, 1)
    # y_ref: (4*Cout, ts)
    y_ref[...] = (
        jnp.dot(w_ref[...], x_ref[...], preferred_element_type=jnp.float32)
        + b_ref[...]
    ).astype(y_ref.dtype)


# --------------------------------------------------------------------------- #
# Kernel 2: fused tap scatter + F.pad + channel concat
# --------------------------------------------------------------------------- #
def _assemble_kernel(y_ref, x1_ref, o_ref, *, Cout, D, H, W, pz0,
                     sh0, dh0, ch, sw0, dw0, cw):
    # y_ref : (4*Cout, H, W)  taps of the (clamped) input depth slice
    # x1_ref: (C1, Hout, Wout) skip-connection slice
    # o_ref : (Cout + C1, Hout, Wout) final output slice
    H2, W2 = 2 * H, 2 * W
    Hout, Wout = o_ref.shape[1], o_ref.shape[2]

    do = pl.program_id(1)
    d_in = do - pz0
    valid = jnp.logical_and(d_in >= 0, d_in < D)

    # Zero the conv-output channels: covers depth pad slabs and H/W pad margins.
    o_ref[0:Cout] = jnp.zeros((Cout, Hout, Wout), o_ref.dtype)

    if ch > 0 and cw > 0:
        @pl.when(valid)
        def _():
            # (2h+kh, 2w+kw) interleave via 0/1 expansion matmuls (MXU),
            # batched over the output channel.
            r_iota = jax.lax.broadcasted_iota(jnp.int32, (H2, H), 0)
            h_iota = jax.lax.broadcasted_iota(jnp.int32, (H2, H), 1)
            w_iota = jax.lax.broadcasted_iota(jnp.int32, (W, W2), 0)
            j_iota = jax.lax.broadcasted_iota(jnp.int32, (W, W2), 1)

            up = jnp.zeros((Cout, H2, W2), jnp.float32)
            for kh in range(2):
                RH = (r_iota == 2 * h_iota + kh).astype(jnp.float32)      # (2H, H)
                RHb = jnp.broadcast_to(RH, (Cout, H2, H))
                s = jnp.zeros((Cout, H, W2), jnp.float32)
                for kw in range(2):
                    CW = (j_iota == 2 * w_iota + kw).astype(jnp.float32)  # (W, 2W)
                    CWb = jnp.broadcast_to(CW, (Cout, W, W2))
                    f0 = (kh * 2 + kw) * Cout
                    tap = y_ref[f0:f0 + Cout].astype(jnp.float32)         # (Cout, H, W)
                    s = s + jnp.einsum('chw,cwj->chj', tap, CWb,
                                       preferred_element_type=jnp.float32)
                up = up + jnp.einsum('crh,chj->crj', RHb, s,
                                     preferred_element_type=jnp.float32)

            # F.pad placement (supports negative pads = crop via static windows).
            o_ref[0:Cout, dh0:dh0 + ch, dw0:dw0 + cw] = (
                up[:, sh0:sh0 + ch, sw0:sw0 + cw].astype(o_ref.dtype))

    # Channel concat: skip connection into the trailing channels.
    o_ref[Cout:] = x1_ref[...].astype(o_ref.dtype)


# --------------------------------------------------------------------------- #
# Wrapper
# --------------------------------------------------------------------------- #
def _round_up(x, m):
    return ((x + m - 1) // m) * m


def _pick_lane_tile(S, Cin, Cout):
    """Lane tile for kernel 1: multiple of 128, large, VMEM/megacore aware."""
    ts = min(2048, _round_up(S, 128))
    # Keep >= 8 spatial steps when there is enough work (v7x has 2 TensorCores).
    while ts > 512 and pl.cdiv(S, ts) < 8:
        ts //= 2
    # VMEM guard: double-buffered x + y blocks kept well under v7x's 64 MiB.
    while ts > 256 and (Cin + 4 * Cout) * ts * 4 * 2 > 24 * 1024 * 1024:
        ts //= 2
    return ts


def up2_forward(x1, x2, weight, bias):
    """Up2.forward. x1, x2 are NCDHW; weight is [Cin, Cout, 1, 2, 2]; bias [Cout]."""
    N, Cin, D, H, W = x2.shape
    Cout = weight.shape[1]
    N1, C1, Dout, Hout, Wout = x1.shape
    assert N1 == N
    S = D * H * W

    # ---- Kernel 1: packed tap matmul, x2 consumed in native layout -----------
    # rows f = kh*2*Cout + kw*Cout + co ; wpk[f, ci] = weight[ci, co, 0, kh, kw]
    w4 = weight[:, :, 0, :, :]                                    # (Cin, Cout, 2, 2)
    wpk = jnp.transpose(w4, (2, 3, 1, 0)).reshape(4 * Cout, Cin)
    bpk = jnp.tile(bias, 4).reshape(4 * Cout, 1).astype(jnp.float32)
    x_flat = x2.reshape(N, Cin, S)                                # free reshape

    ts = _pick_lane_tile(S, Cin, Cout)
    y = pl.pallas_call(
        _tap_matmul_kernel,
        out_shape=jax.ShapeDtypeStruct((N, 4 * Cout, S), jnp.float32),
        grid_spec=pltpu.PrefetchScalarGridSpec(
            num_scalar_prefetch=0,
            grid=(N, pl.cdiv(S, ts)),
            in_specs=[
                pl.BlockSpec((None, Cin, ts), lambda n, s: (n, 0, s)),
                pl.BlockSpec((4 * Cout, Cin), lambda n, s: (0, 0)),
                pl.BlockSpec((4 * Cout, 1), lambda n, s: (0, 0)),
            ],
            out_specs=pl.BlockSpec((None, 4 * Cout, ts), lambda n, s: (n, 0, s)),
        ),
        compiler_params=pltpu.CompilerParams(
            dimension_semantics=("parallel", "parallel")),
    )(x_flat, wpk, bpk)

    # Free reshape only (no XLA copy): rows stay (kh, kw, co), lanes split to (D, H, W).
    y_tap = y.reshape(N, 4 * Cout, D, H, W)

    # ---- Kernel 2: fused tap scatter + F.pad + concat -------------------------
    diffZ, diffY, diffX = Dout - D, Hout - 2 * H, Wout - 2 * W
    pz0 = diffZ // 2
    py0, py1 = diffY // 2, diffY - diffY // 2
    px0, px1 = diffX // 2, diffX - diffX // 2
    # static source/dest copy windows (negative pads crop, matching F.pad)
    sh0, dh0 = max(-py0, 0), max(py0, 0)
    ch = max(2 * H - sh0 - max(-py1, 0), 0)
    sw0, dw0 = max(-px0, 0), max(px0, 0)
    cw = max(2 * W - sw0 - max(-px1, 0), 0)

    Ctot = Cout + C1
    kernel2 = functools.partial(
        _assemble_kernel, Cout=Cout, D=D, H=H, W=W, pz0=pz0,
        sh0=sh0, dh0=dh0, ch=ch, sw0=sw0, dw0=dw0, cw=cw)

    out = pl.pallas_call(
        kernel2,
        out_shape=jax.ShapeDtypeStruct((N, Ctot, Dout, Hout, Wout), x1.dtype),
        grid_spec=pltpu.PrefetchScalarGridSpec(
            num_scalar_prefetch=0,
            grid=(N, Dout),
            in_specs=[
                pl.BlockSpec(
                    (None, 4 * Cout, None, H, W),
                    lambda n, do: (n, 0, jnp.clip(do - pz0, 0, D - 1), 0, 0)),
                pl.BlockSpec(
                    (None, C1, None, Hout, Wout),
                    lambda n, do: (n, 0, do, 0, 0)),
            ],
            out_specs=pl.BlockSpec(
                (None, Ctot, None, Hout, Wout),
                lambda n, do: (n, 0, do, 0, 0)),
        ),
        compiler_params=pltpu.CompilerParams(
            dimension_semantics=("parallel", "parallel")),
    )(y_tap, x1)
    return out


# --------------------------------------------------------------------------- #
# Pure-JAX reference (no Pallas) for validation
# --------------------------------------------------------------------------- #
def _reference_forward(x1, x2, weight, bias):
    N, Cin, D, H, W = x2.shape
    Cout = weight.shape[1]
    up = jnp.einsum('bcdhw,coyx->bodhywx', x2, weight[:, :, 0, :, :])
    up = up + bias.reshape(1, Cout, 1, 1, 1, 1, 1)
    up = up.reshape(N, Cout, D, 2 * H, 2 * W)
    dZ = x1.shape[2] - up.shape[2]
    dY = x1.shape[3] - up.shape[3]
    dX = x1.shape[4] - up.shape[4]
    up = jnp.pad(
        up,
        ((0, 0), (0, 0),
         (dZ // 2, dZ - dZ // 2),
         (dY // 2, dY - dY // 2),
         (dX // 2, dX - dX // 2)))
    return jnp.concatenate([up, x1], axis=1)


if __name__ == "__main__":
    key = jax.random.PRNGKey(0)
    k1, k2, kw_, kb = jax.random.split(key, 4)

    in_ch, out_ch = 8, 4
    # x2: the tensor being upsampled (N, in_ch, D, H, W)
    x2 = jax.random.normal(k2, (2, in_ch, 4, 8, 8), dtype=jnp.float32)
    # x1: skip connection, one extra voxel per spatial dim -> exercises the pad
    x1 = jax.random.normal(k1, (2, out_ch, 5, 17, 17), dtype=jnp.float32)

    # ConvTranspose3d parameter shapes
    weight = 0.1 * jax.random.normal(kw_, (in_ch, out_ch, 1, 2, 2), dtype=jnp.float32)
    bias = 0.1 * jax.random.normal(kb, (out_ch,), dtype=jnp.float32)

    fwd = jax.jit(up2_forward)
    out = jax.block_until_ready(fwd(x1, x2, weight, bias))

    ref = _reference_forward(x1, x2, weight, bias)
    assert out.shape == (2, 2 * out_ch, 5, 17, 17), out.shape
    assert jnp.allclose(out, ref, atol=1e-5, rtol=1e-5), \
        float(jnp.max(jnp.abs(out - ref)))

    print("KERNEL_OK")
</pallas_src>

<mosaic_0001>
module attributes {stable_mosaic.version = 11 : i64} {
  func.func @_tap_matmul_kernel(%arg0: i32, %arg1: i32, %arg2: memref<1x8x256xf32, #tpu.memory_space<vmem>>, %arg3: memref<16x8xf32, #tpu.memory_space<vmem>>, %arg4: memref<16x1xf32, #tpu.memory_space<vmem>>, %arg5: memref<1x16x256xf32, #tpu.memory_space<vmem>>) attributes {dimension_semantics = [#tpu.dimension_semantics<parallel>, #tpu.dimension_semantics<parallel>], iteration_bounds = array<i64: 2, 1>, scalar_prefetch = 0 : i64, scratch_operands = 0 : i64, tpu.core_type = #tpu.core_type<tc>, window_params = [{transform_indices = @transform_0, window_bounds = array<i64: 1, 8, 256>}, {pipeline_mode = #tpu.pipeline_mode<synchronous>, transform_indices = @transform_1, window_bounds = array<i64: 16, 8>}, {pipeline_mode = #tpu.pipeline_mode<synchronous>, transform_indices = @transform_2, window_bounds = array<i64: 16, 1>}, {transform_indices = @transform_3, window_bounds = array<i64: 1, 16, 256>}]} {
    %c0 = arith.constant 0 : index
    %c0_0 = arith.constant 0 : index
    %0 = vector.load %arg3[%c0, %c0_0] : memref<16x8xf32, #tpu.memory_space<vmem>>, vector<16x8xf32>
    %c0_1 = arith.constant 0 : index
    %c0_2 = arith.constant 0 : index
    %c0_3 = arith.constant 0 : index
    %1 = vector.load %arg2[%c0_1, %c0_2, %c0_3] : memref<1x8x256xf32, #tpu.memory_space<vmem>>, vector<1x8x256xf32>
    %2 = vector.shape_cast %1 : vector<1x8x256xf32> to vector<8x256xf32>
    %cst = arith.constant dense<0.000000e+00> : vector<16x256xf32>
    %3 = tpu.matmul %0, %2, %cst {dimension_numbers = #tpu.dot_dimension_numbers<[1], [0], [0], [1], [0, 0, 1, 1], [], []>} : vector<16x8xf32>, vector<8x256xf32>, vector<16x256xf32> -> vector<16x256xf32>
    %c0_4 = arith.constant 0 : index
    %c0_5 = arith.constant 0 : index
    %4 = vector.load %arg4[%c0_4, %c0_5] : memref<16x1xf32, #tpu.memory_space<vmem>>, vector<16x1xf32>
    %5 = vector.broadcast %4 : vector<16x1xf32> to vector<16x256xf32>
    %6 = arith.addf %3, %5 : vector<16x256xf32>
    %c0_6 = arith.constant 0 : index
    %c0_7 = arith.constant 0 : index
    %c0_8 = arith.constant 0 : index
    %7 = vector.load %arg5[%c0_6, %c0_7, %c0_8] : memref<1x16x256xf32, #tpu.memory_space<vmem>>, vector<1x16x256xf32>
    %8 = vector.shape_cast %7 : vector<1x16x256xf32> to vector<16x256xf32>
    %9 = vector.shape_cast %6 : vector<16x256xf32> to vector<1x16x256xf32>
    tpu.vector_store %arg5[%c0_6, %c0_7, %c0_8], %9 {strides = array<i32>} : memref<1x16x256xf32, #tpu.memory_space<vmem>>, vector<1x16x256xf32>,
    return
  }
  func.func @transform_0(%arg0: i32, %arg1: i32) -> (i32, i32, i32) {
    %c0_i32 = arith.constant 0 : i32
    %c0_i32_0 = arith.constant 0 : i32
    return %arg0, %c0_i32, %arg1 : i32, i32, i32
  }
  func.func @transform_1(%arg0: i32, %arg1: i32) -> (i32, i32) {
    %c0_i32 = arith.constant 0 : i32
    %c0_i32_0 = arith.constant 0 : i32
    %c0_i32_1 = arith.constant 0 : i32
    return %c0_i32, %c0_i32_0 : i32, i32
  }
  func.func @transform_2(%arg0: i32, %arg1: i32) -> (i32, i32) {
    %c0_i32 = arith.constant 0 : i32
    %c0_i32_0 = arith.constant 0 : i32
    %c0_i32_1 = arith.constant 0 : i32
    return %c0_i32, %c0_i32_0 : i32, i32
  }
  func.func @transform_3(%arg0: i32, %arg1: i32) -> (i32, i32, i32) {
    %c0_i32 = arith.constant 0 : i32
    %c0_i32_0 = arith.constant 0 : i32
    return %arg0, %c0_i32, %arg1 : i32, i32, i32
  }
}

module attributes {stable_mosaic.version = 11 : i64} {
  func.func @_assemble_kernel(%arg0: i32, %arg1: i32, %arg2: memref<1x16x1x8x8xf32, #tpu.memory_space<vmem>>, %arg3: memref<1x4x1x17x17xf32, #tpu.memory_space<vmem>>, %arg4: memref<1x8x1x17x17xf32, #tpu.memory_space<vmem>>) attributes {dimension_semantics = [#tpu.dimension_semantics<parallel>, #tpu.dimension_semantics<parallel>], iteration_bounds = array<i64: 2, 5>, scalar_prefetch = 0 : i64, scratch_operands = 0 : i64, tpu.core_type = #tpu.core_type<tc>, window_params = [{transform_indices = @transform_0, window_bounds = array<i64: 1, 16, 1, 8, 8>}, {transform_indices = @transform_1, window_bounds = array<i64: 1, 4, 1, 17, 17>}, {transform_indices = @transform_2, window_bounds = array<i64: 1, 8, 1, 17, 17>}]} {
    %c0_i32 = arith.constant 0 : i32
    %0 = arith.subi %arg1, %c0_i32 : i32
    %c0_i32_0 = arith.constant 0 : i32
    %1 = arith.cmpi sge, %0, %c0_i32_0 : i32
    %c4_i32 = arith.constant 4 : i32
    %2 = arith.cmpi slt, %0, %c4_i32 : i32
    %3 = arith.andi %1, %2 : i1
    %cst = arith.constant 0.000000e+00 : f32
    %4 = vector.broadcast %cst : f32 to vector<4x17x17xf32>
    %c0 = arith.constant 0 : index
    %c0_1 = arith.constant 0 : index
    %c0_2 = arith.constant 0 : index
    %c0_3 = arith.constant 0 : index
    %c0_4 = arith.constant 0 : index
    %5 = vector.load %arg4[%c0, %c0_1, %c0_2, %c0_3, %c0_4] : memref<1x8x1x17x17xf32, #tpu.memory_space<vmem>>, vector<1x4x1x17x17xf32>
    %6 = vector.shape_cast %5 : vector<1x4x1x17x17xf32> to vector<4x17x17xf32>
    %7 = vector.shape_cast %4 : vector<4x17x17xf32> to vector<1x4x1x17x17xf32>
    tpu.vector_store %arg4[%c0, %c0_1, %c0_2, %c0_3, %c0_4], %7 {strides = array<i32>} : memref<1x8x1x17x17xf32, #tpu.memory_space<vmem>>, vector<1x4x1x17x17xf32>,
    %8 = arith.extui %3 : i1 to i32
    %c0_i32_5 = arith.constant 0 : i32
    %9 = arith.cmpi ne, %8, %c0_i32_5 : i32
    scf.if %9 {
      %15 = tpu.iota {dimensions = array<i32: 0>} : vector<16x8xi32>
      %16 = tpu.iota {dimensions = array<i32: 1>} : vector<16x8xi32>
      %17 = tpu.iota {dimensions = array<i32: 0>} : vector<8x16xi32>
      %18 = tpu.iota {dimensions = array<i32: 1>} : vector<8x16xi32>
      %cst_15 = arith.constant 0.000000e+00 : f32
      %19 = vector.broadcast %cst_15 : f32 to vector<4x16x16xf32>
      %c2_i32 = arith.constant 2 : i32
      %20 = vector.broadcast %c2_i32 : i32 to vector<16x8xi32>
      %21 = arith.muli %20, %16 : vector<16x8xi32>
      %c0_i32_16 = arith.constant 0 : i32
      %22 = vector.broadcast %c0_i32_16 : i32 to vector<16x8xi32>
      %23 = arith.addi %21, %22 : vector<16x8xi32>
      %24 = arith.cmpi eq, %15, %23 : vector<16x8xi32>
      %25 = arith.extui %24 : vector<16x8xi1> to vector<16x8xi32>
      %26 = arith.sitofp %25 : vector<16x8xi32> to vector<16x8xf32>
      %27 = vector.shape_cast %26 : vector<16x8xf32> to vector<1x16x8xf32>
      %28 = vector.broadcast %27 : vector<1x16x8xf32> to vector<4x16x8xf32>
      %cst_17 = arith.constant 0.000000e+00 : f32
      %29 = vector.broadcast %cst_17 : f32 to vector<4x8x16xf32>
      %c2_i32_18 = arith.constant 2 : i32
      %30 = vector.broadcast %c2_i32_18 : i32 to vector<8x16xi32>
      %31 = arith.muli %30, %17 : vector<8x16xi32>
      %c0_i32_19 = arith.constant 0 : i32
      %32 = vector.broadcast %c0_i32_19 : i32 to vector<8x16xi32>
      %33 = arith.addi %31, %32 : vector<8x16xi32>
      %34 = arith.cmpi eq, %18, %33 : vector<8x16xi32>
      %35 = arith.extui %34 : vector<8x16xi1> to vector<8x16xi32>
      %36 = arith.sitofp %35 : vector<8x16xi32> to vector<8x16xf32>
      %37 = vector.shape_cast %36 : vector<8x16xf32> to vector<1x8x16xf32>
      %38 = vector.broadcast %37 : vector<1x8x16xf32> to vector<4x8x16xf32>
      %c0_20 = arith.constant 0 : index
      %c0_21 = arith.constant 0 : index
      %c0_22 = arith.constant 0 : index
      %c0_23 = arith.constant 0 : index
      %c0_24 = arith.constant 0 : index
      %39 = vector.load %arg2[%c0_20, %c0_21, %c0_22, %c0_23, %c0_24] : memref<1x16x1x8x8xf32, #tpu.memory_space<vmem>>, vector<1x4x1x8x8xf32>
      %40 = vector.shape_cast %39 : vector<1x4x1x8x8xf32> to vector<4x8x8xf32>
      "tpu.trace_start"() <{level = 10 : i32, message = "chw,cwj->chj"}> : () -> ()
      %cst_25 = arith.constant dense<0.000000e+00> : vector<4x8x16xf32>
      %41 = tpu.matmul %40, %38, %cst_25 {dimension_numbers = #tpu.dot_dimension_numbers<[2], [1], [1], [2], [0, 0, 0, 1, 1, 2], [0], [0]>} : vector<4x8x8xf32>, vector<4x8x16xf32>, vector<4x8x16xf32> -> vector<4x8x16xf32>
      "tpu.trace_stop"() : () -> ()
      %42 = arith.addf %29, %41 : vector<4x8x16xf32>
      %c2_i32_26 = arith.constant 2 : i32
      %43 = vector.broadcast %c2_i32_26 : i32 to vector<8x16xi32>
      %44 = arith.muli %43, %17 : vector<8x16xi32>
      %c1_i32 = arith.constant 1 : i32
      %45 = vector.broadcast %c1_i32 : i32 to vector<8x16xi32>
      %46 = arith.addi %44, %45 : vector<8x16xi32>
      %47 = arith.cmpi eq, %18, %46 : vector<8x16xi32>
      %48 = arith.extui %47 : vector<8x16xi1> to vector<8x16xi32>
      %49 = arith.sitofp %48 : vector<8x16xi32> to vector<8x16xf32>
      %50 = vector.shape_cast %49 : vector<8x16xf32> to vector<1x8x16xf32>
      %51 = vector.broadcast %50 : vector<1x8x16xf32> to vector<4x8x16xf32>
      %c0_27 = arith.constant 0 : index
      %c4_28 = arith.constant 4 : index
      %c0_29 = arith.constant 0 : index
      %c0_30 = arith.constant 0 : index
      %c0_31 = arith.constant 0 : index
      %52 = vector.load %arg2[%c0_27, %c4_28, %c0_29, %c0_30, %c0_31] : memref<1x16x1x8x8xf32, #tpu.memory_space<vmem>>, vector<1x4x1x8x8xf32>
      %53 = vector.shape_cast %52 : vector<1x4x1x8x8xf32> to vector<4x8x8xf32>
      "tpu.trace_start"() <{level = 10 : i32, message = "chw,cwj->chj"}> : () -> ()
      %cst_32 = arith.constant dense<0.000000e+00> : vector<4x8x16xf32>
      %54 = tpu.matmul %53, %51, %cst_32 {dimension_numbers = #tpu.dot_dimension_numbers<[2], [1], [1], [2], [0, 0, 0, 1, 1, 2], [0], [0]>} : vector<4x8x8xf32>, vector<4x8x16xf32>, vector<4x8x16xf32> -> vector<4x8x16xf32>
      "tpu.trace_stop"() : () -> ()
      %55 = arith.addf %42, %54 : vector<4x8x16xf32>
      "tpu.trace_start"() <{level = 10 : i32, message = "crh,chj->crj"}> : () -> ()
      %cst_33 = arith.constant dense<0.000000e+00> : vector<4x16x16xf32>
      %56 = tpu.matmul %28, %55, %cst_33 {dimension_numbers = #tpu.dot_dimension_numbers<[2], [1], [1], [2], [0, 0, 0, 1, 1, 2], [0], [0]>} : vector<4x16x8xf32>, vector<4x8x16xf32>, vector<4x16x16xf32> -> vector<4x16x16xf32>
      "tpu.trace_stop"() : () -> ()
      %57 = arith.addf %19, %56 : vector<4x16x16xf32>
      %c2_i32_34 = arith.constant 2 : i32
      %58 = vector.broadcast %c2_i32_34 : i32 to vector<16x8xi32>
      %59 = arith.muli %58, %16 : vector<16x8xi32>
      %c1_i32_35 = arith.constant 1 : i32
      %60 = vector.broadcast %c1_i32_35 : i32 to vector<16x8xi32>
      %61 = arith.addi %59, %60 : vector<16x8xi32>
      %62 = arith.cmpi eq, %15, %61 : vector<16x8xi32>
      %63 = arith.extui %62 : vector<16x8xi1> to vector<16x8xi32>
      %64 = arith.sitofp %63 : vector<16x8xi32> to vector<16x8xf32>
      %65 = vector.shape_cast %64 : vector<16x8xf32> to vector<1x16x8xf32>
      %66 = vector.broadcast %65 : vector<1x16x8xf32> to vector<4x16x8xf32>
      %cst_36 = arith.constant 0.000000e+00 : f32
      %67 = vector.broadcast %cst_36 : f32 to vector<4x8x16xf32>
      %c2_i32_37 = arith.constant 2 : i32
      %68 = vector.broadcast %c2_i32_37 : i32 to vector<8x16xi32>
      %69 = arith.muli %68, %17 : vector<8x16xi32>
      %c0_i32_38 = arith.constant 0 : i32
      %70 = vector.broadcast %c0_i32_38 : i32 to vector<8x16xi32>
      %71 = arith.addi %69, %70 : vector<8x16xi32>
      %72 = arith.cmpi eq, %18, %71 : vector<8x16xi32>
      %73 = arith.extui %72 : vector<8x16xi1> to vector<8x16xi32>
      %74 = arith.sitofp %73 : vector<8x16xi32> to vector<8x16xf32>
      %75 = vector.shape_cast %74 : vector<8x16xf32> to vector<1x8x16xf32>
      %76 = vector.broadcast %75 : vector<1x8x16xf32> to vector<4x8x16xf32>
      %c0_39 = arith.constant 0 : index
      %c8 = arith.constant 8 : index
      %c0_40 = arith.constant 0 : index
      %c0_41 = arith.constant 0 : index
      %c0_42 = arith.constant 0 : index
      %77 = vector.load %arg2[%c0_39, %c8, %c0_40, %c0_41, %c0_42] : memref<1x16x1x8x8xf32, #tpu.memory_space<vmem>>, vector<1x4x1x8x8xf32>
      %78 = vector.shape_cast %77 : vector<1x4x1x8x8xf32> to vector<4x8x8xf32>
      "tpu.trace_start"() <{level = 10 : i32, message = "chw,cwj->chj"}> : () -> ()
      %cst_43 = arith.constant dense<0.000000e+00> : vector<4x8x16xf32>
      %79 = tpu.matmul %78, %76, %cst_43 {dimension_numbers = #tpu.dot_dimension_numbers<[2], [1], [1], [2], [0, 0, 0, 1, 1, 2], [0], [0]>} : vector<4x8x8xf32>, vector<4x8x16xf32>, vector<4x8x16xf32> -> vector<4x8x16xf32>
      "tpu.trace_stop"() : () -> ()
      %80 = arith.addf %67, %79 : vector<4x8x16xf32>
      %c2_i32_44 = arith.constant 2 : i32
      %81 = vector.broadcast %c2_i32_44 : i32 to vector<8x16xi32>
      %82 = arith.muli %81, %17 : vector<8x16xi32>
      %c1_i32_45 = arith.constant 1 : i32
      %83 = vector.broadcast %c1_i32_45 : i32 to vector<8x16xi32>
      %84 = arith.addi %82, %83 : vector<8x16xi32>
      %85 = arith.cmpi eq, %18, %84 : vector<8x16xi32>
      %86 = arith.extui %85 : vector<8x16xi1> to vector<8x16xi32>
      %87 = arith.sitofp %86 : vector<8x16xi32> to vector<8x16xf32>
      %88 = vector.shape_cast %87 : vector<8x16xf32> to vector<1x8x16xf32>
      %89 = vector.broadcast %88 : vector<1x8x16xf32> to vector<4x8x16xf32>
      %c0_46 = arith.constant 0 : index
      %c12 = arith.constant 12 : index
      %c0_47 = arith.constant 0 : index
      %c0_48 = arith.constant 0 : index
      %c0_49 = arith.constant 0 : index
      %90 = vector.load %arg2[%c0_46, %c12, %c0_47, %c0_48, %c0_49] : memref<1x16x1x8x8xf32, #tpu.memory_space<vmem>>, vector<1x4x1x8x8xf32>
      %91 = vector.shape_cast %90 : vector<1x4x1x8x8xf32> to vector<4x8x8xf32>
      "tpu.trace_start"() <{level = 10 : i32, message = "chw,cwj->chj"}> : () -> ()
      %cst_50 = arith.constant dense<0.000000e+00> : vector<4x8x16xf32>
      %92 = tpu.matmul %91, %89, %cst_50 {dimension_numbers = #tpu.dot_dimension_numbers<[2], [1], [1], [2], [0, 0, 0, 1, 1, 2], [0], [0]>} : vector<4x8x8xf32>, vector<4x8x16xf32>, vector<4x8x16xf32> -> vector<4x8x16xf32>
      "tpu.trace_stop"() : () -> ()
      %93 = arith.addf %80, %92 : vector<4x8x16xf32>
      "tpu.trace_start"() <{level = 10 : i32, message = "crh,chj->crj"}> : () -> ()
      %cst_51 = arith.constant dense<0.000000e+00> : vector<4x16x16xf32>
      %94 = tpu.matmul %66, %93, %cst_51 {dimension_numbers = #tpu.dot_dimension_numbers<[2], [1], [1], [2], [0, 0, 0, 1, 1, 2], [0], [0]>} : vector<4x16x8xf32>, vector<4x8x16xf32>, vector<4x16x16xf32> -> vector<4x16x16xf32>
      "tpu.trace_stop"() : () -> ()
      %95 = arith.addf %57, %94 : vector<4x16x16xf32>
      %c0_52 = arith.constant 0 : index
      %c0_53 = arith.constant 0 : index
      %c0_54 = arith.constant 0 : index
      %c0_55 = arith.constant 0 : index
      %c0_56 = arith.constant 0 : index
      %96 = vector.load %arg4[%c0_52, %c0_53, %c0_54, %c0_55, %c0_56] : memref<1x8x1x17x17xf32, #tpu.memory_space<vmem>>, vector<1x4x1x16x16xf32>
      %97 = vector.shape_cast %96 : vector<1x4x1x16x16xf32> to vector<4x16x16xf32>
      %98 = vector.shape_cast %95 : vector<4x16x16xf32> to vector<1x4x1x16x16xf32>
      tpu.vector_store %arg4[%c0_52, %c0_53, %c0_54, %c0_55, %c0_56], %98 {strides = array<i32>} : memref<1x8x1x17x17xf32, #tpu.memory_space<vmem>>, vector<1x4x1x16x16xf32>,
    } else {
    }
    %c0_6 = arith.constant 0 : index
    %c0_7 = arith.constant 0 : index
    %c0_8 = arith.constant 0 : index
    %c0_9 = arith.constant 0 : index
    %c0_10 = arith.constant 0 : index
    %10 = vector.load %arg3[%c0_6, %c0_7, %c0_8, %c0_9, %c0_10] : memref<1x4x1x17x17xf32, #tpu.memory_space<vmem>>, vector<1x4x1x17x17xf32>
    %11 = vector.shape_cast %10 : vector<1x4x1x17x17xf32> to vector<4x17x17xf32>
    %c0_11 = arith.constant 0 : index
    %c4 = arith.constant 4 : index
    %c0_12 = arith.constant 0 : index
    %c0_13 = arith.constant 0 : index
    %c0_14 = arith.constant 0 : index
    %12 = vector.load %arg4[%c0_11, %c4, %c0_12, %c0_13, %c0_14] : memref<1x8x1x17x17xf32, #tpu.memory_space<vmem>>, vector<1x4x1x17x17xf32>
    %13 = vector.shape_cast %12 : vector<1x4x1x17x17xf32> to vector<4x17x17xf32>
    %14 = vector.shape_cast %11 : vector<4x17x17xf32> to vector<1x4x1x17x17xf32>
    tpu.vector_store %arg4[%c0_11, %c4, %c0_12, %c0_13, %c0_14], %14 {strides = array<i32>} : memref<1x8x1x17x17xf32, #tpu.memory_space<vmem>>, vector<1x4x1x17x17xf32>,
    return
  }
  func.func @transform_0(%arg0: i32, %arg1: i32) -> (i32, i32, i32, i32, i32) {
    %c0_i32 = arith.constant 0 : i32
    %0 = arith.subi %arg1, %c0_i32 : i32
    %c0_i32_0 = arith.constant 0 : i32
    %c3_i32 = arith.constant 3 : i32
    %1 = arith.maxsi %c0_i32_0, %0 : i32
    %2 = arith.minsi %c3_i32, %1 : i32
    %c0_i32_1 = arith.constant 0 : i32
    %c0_i32_2 = arith.constant 0 : i32
    %c0_i32_3 = arith.constant 0 : i32
    %c0_i32_4 = arith.constant 0 : i32
    return %arg0, %c0_i32_1, %2, %c0_i32_2, %c0_i32_3 : i32, i32, i32, i32, i32
  }
  func.func @transform_1(%arg0: i32, %arg1: i32) -> (i32, i32, i32, i32, i32) {
    %c0_i32 = arith.constant 0 : i32
    %c0_i32_0 = arith.constant 0 : i32
    %c0_i32_1 = arith.constant 0 : i32
    %c0_i32_2 = arith.constant 0 : i32
    return %arg0, %c0_i32, %arg1, %c0_i32_0, %c0_i32_1 : i32, i32, i32, i32, i32
  }
  func.func @transform_2(%arg0: i32, %arg1: i32) -> (i32, i32, i32, i32, i32) {
    %c0_i32 = arith.constant 0 : i32
    %c0_i32_0 = arith.constant 0 : i32
    %c0_i32_1 = arith.constant 0 : i32
    %c0_i32_2 = arith.constant 0 : i32
    return %arg0, %c0_i32, %arg1, %c0_i32_0, %c0_i32_1 : i32, i32, i32, i32, i32
  }
}

</mosaic_0001>

<llo_original>
// kernel: tile.0
$region0: #{tile.0}
  %s0 = inlined_call_operand.vmem [shape: f32[4,4], index: 0, kind: input, shape index: {}]
  %s1 = inlined_call_operand.vmem [shape: f32[16,1], index: 1, kind: output, shape index: {}]
  $region1: #{tile.0} parent=0
    #allocation0 [shape = 'u8[4096]{0}', space=vmem, size = 0x1000, scoped, tag = 'scoped mem for input reshape']
    %s3 = ssub.s32 16, 1
    %v4 = vld [vmem:[%s0] sm:%s3]
    %5 = vst [vmem:[#allocation0] sm:%s3] %v4
    %v6 = vld [vmem:[#allocation0] sm:$0xf]
    %vm7 = vcmask 7168
    %8 = vst.msk [vmem:[%s1] ss:$4 sm:$0xf] %vm7, %v6
    %v9 = vld [vmem:[#allocation0] sm:$0xf]
    %10 = vrot.lane.b32.xlu0 %v9, 127
    %v11 = vpop.permute.xlu0 %10
    %vm12 = vcmask 7168
    %s13 = scalar_lea.vmem %s1, 1
    %14 = vst.msk [vmem:[%s13] ss:$4 sm:$0xf] %vm12, %v11
    %v15 = vld [vmem:[#allocation0] sm:$0xf]
    %16 = vrot.lane.b32.xlu0 %v15, 126
    %v17 = vpop.permute.xlu0 %16
    %vm18 = vcmask 7168
    %s19 = scalar_lea.vmem %s1, 2
    %20 = vst.msk [vmem:[%s19] ss:$4 sm:$0xf] %vm18, %v17
    %v21 = vld [vmem:[#allocation0] sm:$0xf]
    %22 = vrot.lane.b32.xlu0 %v21, 125
    %v23 = vpop.permute.xlu0 %22
    %vm24 = vcmask 7168
    %s25 = scalar_lea.vmem %s1, 3
    %26 = vst.msk [vmem:[%s25] ss:$4 sm:$0xf] %vm24, %v23

// kernel: tile.8
$region0: #{tile.8}
  #allocation0 [shape = 's32[1]{0}', space=sflag, size = 0x4, scoped, tag = 'scoped memory for tile.8']
  %s0 = inlined_call_operand.vmem [shape: f32[4], index: 0, kind: input, shape index: {}]
  %s1 = inlined_call_operand.vmem [shape: f32[4,4], index: 1, kind: output, shape index: {}]
  // Predicated region
  $region2: #{tile.8} parent=0 // pred_check
    _
  $region3: #{tile.8} parent=0 // pred_check_branch
    %3 = sbr.rel (0) target = $region5
  $region4: #{tile.8} parent=0 // pred_region
    _
  $region5: #{tile.8} parent=0 // pred_fallthru
    _
  %v4 = vld [vmem:[%s0] ss:$0 sm:$0xff]
  %5 = vst [vmem:[%s1] sm:$0xf] %v4

// kernel: up2_forward.2
$region0: #{up2_forward.2}
  #allocation0 [shape = 'u32[]', space=smem, size = 0x4, offset = 0x4, fixed_abs, tag = 'smem constant byte address 0x4 - core index']
  #allocation1 [shape = 'u32[72,128]{1,0:T(1,128)}', space=vmem, size = 0x9000, scoped, tag = 'internal scratch']
  %s0 = inlined_call_operand.vmem [shape: f32[2,8,256], index: 0, kind: input, shape index: {}]
  %s1 = inlined_call_operand.vmem [shape: f32[16,8], index: 1, kind: input, shape index: {}]
  %s2 = inlined_call_operand.vmem [shape: f32[16,1], index: 2, kind: input, shape index: {}]
  %s3 = inlined_call_operand.vmem [shape: f32[2,16,256], index: 3, kind: output, shape index: {}]
  %s4 = sld [smem:[#allocation0]]
  $region45: #{up2_forward.2} parent=0
    _
  %s6 = ssub.s32 1, %s4
  %s7 = scalar_select 0, %s6, %s4
  loop: start=0, step=1, limit=4
  $region2: #{up2_forward.2} parent=0 // loop_pre_header
    _
  $region3: #{up2_forward.2} parent=0 // loop_header
    %s9 = sphi 0, %s13
    %p10 = scmp.ge.s32.totalorder %s9, 4
    %s16 = sphi 0, %s28
    %s17 = sphi 0, %s24
    %s18 = sphi 0, %s16
    %s19 = sphi 0, %s17
    %s20 = sphi 0, %s18
    %s21 = sphi 0, %s19
    %s33 = sphi 0, %s35
    %s36 = sphi 0, %s33
    %s37 = sphi 0, %s36
    %s53 = sphi 0, %s37
    %s57 = sphi 0, %s57
    %s59 = sphi 0, %s57
    %s60 = sphi 0, %s59
    %s74 = sphi 0, %s60
    %s78 = sphi 0, %s78
    %s80 = sphi 0, %s78
    %s81 = sphi 0, %s80
    %s95 = sphi 0, %s81
    %s103 = sphi 0, %s105
    %s106 = sphi 0, %s103
    %s107 = sphi 0, %s106
    %s123 = sphi 0, %s107
  $region4: #{up2_forward.2} parent=0 // loop_header_branch
    %12 = sbr.rel (%p10) target = $region8
  $region5: #{up2_forward.2} parent=0 // loop_body
    %s14 = ssub.s32 %s9, 1
    %s15 = ssub.s32 %s9, 2
    %s22 = sadd.s32 1, %s17
    %p23 = scmp.ge.s32.totalorder %s22, 1
    %s24 = scalar_select %p23, 0, %s22
    %s25 = sadd.s32 1, %s16
    %s26 = scalar_select %p23, %s25, %s16
    %p27 = scmp.ge.s32.totalorder %s26, 2
    %s28 = scalar_select %p27, 0, %s26
    %s29 = ssub.s32 %s16, %s28
    %s30 = ssub.s32 %s17, %s24
    %s31 = sor.u32 %s29, %s30
    %p32 = scmp.eq.s32.totalorder %s31, 0
    %s34 = sadd.s32 %s33, 1
    %s35 = scalar_select %p32, %s33, %s34
    %p38 = pneg %p32
    %p39 = scmp.eq.s32.totalorder %s9, 1
    %p40 = por %p38, %p39
    %p41 = scmp.ne.s32.totalorder %s33, %s36
    %p42 = scmp.eq.s32.totalorder %s9, 0
    %p43 = por %p41, %p42
    %p44 = scmp.ne.s32.totalorder %s33, %s36
    %p45 = scmp.eq.s32.totalorder %s14, 1
    %p46 = por %p44, %p45
    %p47 = scmp.ne.s32.totalorder %s36, %s37
    %p48 = scmp.eq.s32.totalorder %s14, 0
    %p49 = por %p47, %p48
    %p50 = scmp.ne.s32.totalorder %s36, %s37
    %p51 = scmp.eq.s32.totalorder %s15, 1
    %p52 = por %p50, %p51
    %p54 = scmp.ne.s32.totalorder %s37, %s53
    %p55 = scmp.eq.s32.totalorder %s15, 0
    %p56 = por %p54, %p55
    %s58 = sadd.s32 %s57, 1
    %p61 = scmp.eq.s32.totalorder %s9, 1
    %p62 = scmp.ne.s32.totalorder %s57, %s59
    %p63 = scmp.eq.s32.totalorder %s9, 0
    %p64 = por %p62, %p63
    %p65 = scmp.ne.s32.totalorder %s57, %s59
    %p66 = scmp.eq.s32.totalorder %s14, 1
    %p67 = por %p65, %p66
    %p68 = scmp.ne.s32.totalorder %s59, %s60
    %p69 = scmp.eq.s32.totalorder %s14, 0
    %p70 = por %p68, %p69
    %p71 = scmp.ne.s32.totalorder %s59, %s60
    %p72 = scmp.eq.s32.totalorder %s15, 1
    %p73 = por %p71, %p72
    %p75 = scmp.ne.s32.totalorder %s60, %s74
    %p76 = scmp.eq.s32.totalorder %s15, 0
    %p77 = por %p75, %p76
    %s79 = sadd.s32 %s78, 1
    %p82 = scmp.eq.s32.totalorder %s9, 1
    %p83 = scmp.ne.s32.totalorder %s78, %s80
    %p84 = scmp.eq.s32.totalorder %s9, 0
    %p85 = por %p83, %p84
    %p86 = scmp.ne.s32.totalorder %s78, %s80
    %p87 = scmp.eq.s32.totalorder %s14, 1
    %p88 = por %p86, %p87
    %p89 = scmp.ne.s32.totalorder %s80, %s81
    %p90 = scmp.eq.s32.totalorder %s14, 0
    %p91 = por %p89, %p90
    %p92 = scmp.ne.s32.totalorder %s80, %s81
    %p93 = scmp.eq.s32.totalorder %s15, 1
    %p94 = por %p92, %p93
    %p96 = scmp.ne.s32.totalorder %s81, %s95
    %p97 = scmp.eq.s32.totalorder %s15, 0
    %p98 = por %p96, %p97
    %s99 = ssub.s32 %s16, %s28
    %s100 = ssub.s32 %s17, %s24
    %s101 = sor.u32 %s99, %s100
    %p102 = scmp.eq.s32.totalorder %s101, 0
    %s104 = sadd.s32 %s103, 1
    %s105 = scalar_select %p102, %s103, %s104
    %p108 = pneg %p102
    %p109 = scmp.eq.s32.totalorder %s9, 1
    %p110 = por %p108, %p109
    %p111 = scmp.ne.s32.totalorder %s103, %s106
    %p112 = scmp.eq.s32.totalorder %s9, 0
    %p113 = por %p111, %p112
    %p114 = scmp.ne.s32.totalorder %s103, %s106
    %p115 = scmp.eq.s32.totalorder %s14, 1
    %p116 = por %p114, %p115
    %p117 = scmp.ne.s32.totalorder %s106, %s107
    %p118 = scmp.eq.s32.totalorder %s14, 0
    %p119 = por %p117, %p118
    %p120 = scmp.ne.s32.totalorder %s106, %s107
    %p121 = scmp.eq.s32.totalorder %s15, 1
    %p122 = por %p120, %p121
    %p124 = scmp.ne.s32.totalorder %s107, %s123
    %p125 = scmp.eq.s32.totalorder %s15, 0
    %p126 = por %p124, %p125
    %p127 = scmp.le.s32.totalorder 1, %s9
    %p128 = scmp.lt.s32.totalorder %s9, 3
    %p129 = pnand %p127, %p128
    %p130 = pneg %p129
    // Predicated region
    $region9: #{up2_forward.2} parent=5 // pred_check
      _
    $region10: #{up2_forward.2} parent=5 // pred_check_branch
      %132 = sbr.rel (%p129) target = $region12
    $region11: #{up2_forward.2} parent=5 // pred_region
      %s133 = ssub.s32 %s9, 1
      // Predicated region
      $region13: #{up2_forward.2} parent=11 // pred_check
        %p134 = pneg %p70
      $region14: #{up2_forward.2} parent=11 // pred_check_branch
        %136 = sbr.rel (%p134) target = $region16
      $region15: #{up2_forward.2} parent=11 // pred_region
        _
      $region16: #{up2_forward.2} parent=11 // pred_fallthru
        _
      // Predicated region
      $region17: #{up2_forward.2} parent=11 // pred_check
        %p137 = pneg %p91
      $region18: #{up2_forward.2} parent=11 // pred_check_branch
        %139 = sbr.rel (%p137) target = $region20
      $region19: #{up2_forward.2} parent=11 // pred_region
        _
      $region20: #{up2_forward.2} parent=11 // pred_fallthru
        _
    $region12: #{up2_forward.2} parent=5 // pred_fallthru
      _
    %p140 = scmp.lt.s32.totalorder %s9, 2
    // Predicated region
    $region21: #{up2_forward.2} parent=5 // pred_check
      %p141 = pneg %p140
    $region22: #{up2_forward.2} parent=5 // pred_check_branch
      %143 = sbr.rel (%p141) target = $region24
    $region23: #{up2_forward.2} parent=5 // pred_region
      // Predicated region
      $region25: #{up2_forward.2} parent=23 // pred_check
        %p144 = pneg %p43
      $region26: #{up2_forward.2} parent=23 // pred_check_branch
        %146 = sbr.rel (%p144) target = $region28
      $region27: #{up2_forward.2} parent=23 // pred_region
        %s147 = smul.u32 2, %s17
        %p148 = scmp.lt.s32.totalorder %s16, 1
        %s149 = scalar_select %p148, %s16, 1
        %p150 = scmp.lt.s32.totalorder %s147, 1
        %s151 = scalar_select %p150, %s147, 1
        %s152 = smul.addr %s149, 2
        %s153 = sadd.s32 %s151, %s152
        %s154 = smul.addr %s153, 8
        %s155 = scalar_lea.vmem %s0, %s154
        %s156 = smul.u32 2, %s17
      $region28: #{up2_forward.2} parent=23 // pred_fallthru
        _
    $region24: #{up2_forward.2} parent=5 // pred_fallthru
      _
    %p157 = scmp.le.s32.totalorder 1, %s9
    %p158 = scmp.lt.s32.totalorder %s9, 3
    %p159 = pnand %p157, %p158
    %p160 = pneg %p159
    // Predicated region
    $region29: #{up2_forward.2} parent=5 // pred_check
      _
    $region30: #{up2_forward.2} parent=5 // pred_check_branch
      %162 = sbr.rel (%p159) target = $region32
    $region31: #{up2_forward.2} parent=5 // pred_region
      %s163 = ssub.s32 %s9, 1
      %s164 = smul.u32 2, %s19
      %p165 = scmp.lt.s32.totalorder %s18, 1
      %s166 = scalar_select %p165, %s18, 1
      %p167 = scmp.lt.s32.totalorder %s164, 1
      %s168 = scalar_select %p167, %s164, 1
      %s169 = smul.addr %s166, 2
      %s170 = sadd.s32 %s168, %s169
      %s171 = smul.addr %s170, 8
      %s172 = scalar_lea.vmem %s0, %s171
      %p173 = pneg %p49
      %p174 = pneg %p46
      %p175 = pneg %p70
      %p176 = pneg %p67
      %p177 = pneg %p91
      %p178 = pneg %p88
      %p179 = pneg %p119
      %p180 = pneg %p116
      %s181 = smul.u32 2, %s19
      %p182 = scmp.lt.s32.totalorder %s18, 1
      %s183 = scalar_select %p182, %s18, 1
      %p184 = scmp.lt.s32.totalorder %s181, 1
      %s185 = scalar_select %p184, %s181, 1
      %s186 = smul.addr %s183, 4
      %s187 = sadd.s32 %s185, %s186
      %s188 = smul.addr %s187, 8
      %s189 = scalar_lea.vmem %s3, %s188
      %s190 = smul.u32 2, %s19
      %p191 = scmp.lt.s32.totalorder %s18, 1
      %s192 = scalar_select %p191, %s18, 1
      %p193 = scmp.lt.s32.totalorder %s190, 1
      %s194 = scalar_select %p193, %s190, 1
      %s195 = smul.addr %s192, 2
      %s196 = sadd.s32 %s194, %s195
      %s197 = smul.addr %s196, 8
      %s198 = scalar_lea.vmem %s0, %s197
      %s199 = smul.u32 2, %s19
      %s200 = smul.u32 2, %s19
      %p201 = scmp.lt.s32.totalorder %s18, 1
      %s202 = scalar_select %p201, %s18, 1
      %p203 = scmp.lt.s32.totalorder %s200, 1
      %s204 = scalar_select %p203, %s200, 1
      %s205 = smul.addr %s202, 4
      %s206 = sadd.s32 %s204, %s205
      %s207 = smul.addr %s206, 8
      %s208 = scalar_lea.vmem %s3, %s207
      %s209 = smul.u32 2, %s19
      %v210 = vld [vmem:[%s1] sm:$0xff]
      %v211 = vld [vmem:[%s1 + $0x8] sm:$0xff]
      %v212 = vld [vmem:[%s198] sm:$0xff]
      %v213 = vld [vmem:[%s198 + $0x8] sm:$0xff]
      %v214 = vld [vmem:[%s2] sm:$0xff]
      %v215 = vld [vmem:[%s2 + $0x8] sm:$0xff]
      %217 = vset.pattern.permute.xlu0 0
      %218 = vperm.xlu0 %217, %v214
      %v219 = vpop.permute.xlu0 %218
      %222 = vset.pattern.permute.xlu0 0
      %223 = vperm.xlu0 %222, %v215
      %v224 = vpop.permute.xlu0 %223
      %vm226 = vcmask 64512
      %v228 = vsel %vm226, %v210, 0
      %v231 = vsel %vm226, %v211, 0
      %233 = vmatpush.msra.mxu0 0.0
      %234 = vmatpush.msra.mxu0 0.0
      %235 = vmatpush.msra.mxu0 0.0
      %236 = vmatpush.msra.mxu0 0.0
      %237 = vmatpush.msra.mxu0 0.0
      %238 = vmatpush.msra.mxu0 0.0
      %239 = vmatpush.msra.mxu0 0.0
      %240 = vmatpush.msra.mxu0 0.0
      %241 = vmatpush.msra.mxu0 0.0
      %242 = vmatpush.msra.mxu0 0.0
      %243 = vmatpush.msra.mxu0 0.0
      %244 = vmatpush.msra.mxu0 0.0
      %245 = vmatpush.msra.mxu0 0.0
      %246 = vmatpush.msra.mxu0 0.0
      %247 = vmatpush.msra.mxu0 0.0
      %248 = vmatpush.msra.mxu0 %v212
      %249 = vmatmul.f32.gmra.mxu0 %v228
      %v250 = vpop.f32.mrf.mxu0
      %v251 = vadd.f32 %v219, %v250
      %252 = vmatmul.f32.gmra.mxu0 %v231
      %v253 = vpop.f32.mrf.mxu0
      %v254 = vadd.f32 %v224, %v253
      %255 = vdwg.mxu0
      %256 = vmatpush.msra.mxu0 0.0
      %257 = vmatpush.msra.mxu0 0.0
      %258 = vmatpush.msra.mxu0 0.0
      %259 = vmatpush.msra.mxu0 0.0
      %260 = vmatpush.msra.mxu0 0.0
      %261 = vmatpush.msra.mxu0 0.0
      %262 = vmatpush.msra.mxu0 0.0
      %263 = vmatpush.msra.mxu0 0.0
      %264 = vmatpush.msra.mxu0 0.0
      %265 = vmatpush.msra.mxu0 0.0
      %266 = vmatpush.msra.mxu0 0.0
      %267 = vmatpush.msra.mxu0 0.0
      %268 = vmatpush.msra.mxu0 0.0
      %269 = vmatpush.msra.mxu0 0.0
      %270 = vmatpush.msra.mxu0 0.0
      %271 = vmatpush.msra.mxu0 %v213
      %272 = vmatmul.f32.gmra.mxu0 %v228
      %v273 = vpop.f32.mrf.mxu0
      %v274 = vadd.f32 %v219, %v273
      %275 = vmatmul.f32.gmra.mxu0 %v231
      %v276 = vpop.f32.mrf.mxu0
      %v277 = vadd.f32 %v224, %v276
      %278 = vdwg.mxu0
      %279 = vst [vmem:[%s208] sm:$0xff] %v251
      %280 = vst [vmem:[%s208 + $0x8] sm:$0xff] %v274
      %281 = vst [vmem:[%s208 + $0x10] sm:$0xff] %v254
      %282 = vst [vmem:[%s208 + $0x18] sm:$0xff] %v277
      %s283 = smul.u32 2, %s19
      %p284 = scmp.lt.s32.totalorder %s18, 1
      %s285 = scalar_select %p284, %s18, 1
      %p286 = scmp.lt.s32.totalorder %s283, 1
      %s287 = scalar_select %p286, %s283, 1
      %s288 = smul.addr %s285, 4
      %s289 = sadd.s32 %s287, %s288
      %s290 = smul.addr %s289, 8
      %s291 = scalar_lea.vmem %s3, %s290
      // Predicated region
      $region33: #{up2_forward.2} parent=31 // pred_check
        %p292 = pneg %p116
      $region34: #{up2_forward.2} parent=31 // pred_check_branch
        %294 = sbr.rel (%p292) target = $region36
      $region35: #{up2_forward.2} parent=31 // pred_region
        %s295 = smul.u32 2, %s19
      $region36: #{up2_forward.2} parent=31 // pred_fallthru
        _
    $region32: #{up2_forward.2} parent=5 // pred_fallthru
      _
    %p296 = scmp.le.s32.totalorder 2, %s9
    // Predicated region
    $region37: #{up2_forward.2} parent=5 // pred_check
      %p297 = pneg %p296
    $region38: #{up2_forward.2} parent=5 // pred_check_branch
      %299 = sbr.rel (%p297) target = $region40
    $region39: #{up2_forward.2} parent=5 // pred_region
      %s300 = ssub.s32 %s9, 2
      // Predicated region
      $region41: #{up2_forward.2} parent=39 // pred_check
        %p301 = pneg %p122
      $region42: #{up2_forward.2} parent=39 // pred_check_branch
        %303 = sbr.rel (%p301) target = $region44
      $region43: #{up2_forward.2} parent=39 // pred_region
        %s304 = smul.u32 2, %s21
        %p305 = scmp.lt.s32.totalorder %s20, 1
        %s306 = scalar_select %p305, %s20, 1
        %p307 = scmp.lt.s32.totalorder %s304, 1
        %s308 = scalar_select %p307, %s304, 1
        %s309 = smul.addr %s306, 4
        %s310 = sadd.s32 %s308, %s309
        %s311 = smul.addr %s310, 8
        %s312 = scalar_lea.vmem %s3, %s311
      $region44: #{up2_forward.2} parent=39 // pred_fallthru
        _
    $region40: #{up2_forward.2} parent=5 // pred_fallthru
      _
  $region6: #{up2_forward.2} parent=0 // loop_footer
    %s13 = sadd.s32 1, %s9
  $region7: #{up2_forward.2} parent=0 // loop_footer_branch
    %8 = sbr.rel target = $region3
  $region8: #{up2_forward.2} parent=0 // loop_exit
    _

// kernel: up2_forward.3
$region0: #{up2_forward.3}
  #allocation0 [shape = 'u32[]', space=smem, size = 0x4, offset = 0x4, fixed_abs, tag = 'smem constant byte address 0x4 - core index']
  #allocation1 [shape = 'u32[72,128]{1,0:T(1,128)}', space=vmem, size = 0x9000, scoped, tag = 'internal scratch']
  %s0 = inlined_call_operand.vmem [shape: f32[2,16,4,8,8], index: 0, kind: input, shape index: {}]
  %s1 = inlined_call_operand.vmem [shape: f32[2,4,5,17,17], index: 1, kind: input, shape index: {}]
  %s2 = inlined_call_operand.vmem [shape: f32[2,8,5,17,17], index: 2, kind: output, shape index: {}]
  %s3 = sld [smem:[#allocation0]]
  $region155: #{up2_forward.3} parent=0
    _
  %s5 = ssub.s32 1, %s3
  %s6 = scalar_select 0, %s5, %s3
  $region1: #{up2_forward.3} parent=0
    #allocation2 [shape = 'u8[131072]{0}', space=vmem, size = 0x20000, scoped, tag = 'input window, operand 0']
    #allocation3 [shape = 'u8[98304]{0}', space=vmem, size = 0x18000, scoped, tag = 'input window, operand 1']
    #allocation4 [shape = 'u8[196608]{0}', space=vmem, size = 0x30000, scoped, tag = 'output window, operand 0']
    loop: start=0, step=1, limit=12
    $region2: #{up2_forward.3} parent=1 // loop_pre_header
      _
    $region3: #{up2_forward.3} parent=1 // loop_header
      %s8 = sphi 0, %s12
      %p9 = scmp.ge.s32.totalorder %s8, 12
      %s15 = sphi 0, %s27
      %s16 = sphi 0, %s23
      %s17 = sphi 0, %s15
      %s18 = sphi 0, %s16
      %s19 = sphi 0, %s17
      %s20 = sphi 0, %s18
      %s40 = sphi 0, %s42
      %s43 = sphi 0, %s40
      %s44 = sphi 0, %s43
      %s60 = sphi 0, %s44
      %s68 = sphi 0, %s70
      %s71 = sphi 0, %s68
      %s72 = sphi 0, %s71
      %s88 = sphi 0, %s72
      %s96 = sphi 0, %s98
      %s99 = sphi 0, %s96
      %s100 = sphi 0, %s99
      %s116 = sphi 0, %s100
    $region4: #{up2_forward.3} parent=1 // loop_header_branch
      %11 = sbr.rel (%p9) target = $region8
    $region5: #{up2_forward.3} parent=1 // loop_body
      %s13 = ssub.s32 %s8, 1
      %s14 = ssub.s32 %s8, 2
      %s21 = sadd.s32 1, %s16
      %p22 = scmp.ge.s32.totalorder %s21, 5
      %s23 = scalar_select %p22, 0, %s21
      %s24 = sadd.s32 1, %s15
      %s25 = scalar_select %p22, %s24, %s15
      %p26 = scmp.ge.s32.totalorder %s25, 2
      %s27 = scalar_select %p26, 0, %s25
      %p28 = scmp.gt.s32.totalorder %s16, 0
      %s29 = scalar_select %p28, %s16, 0
      %p30 = scmp.lt.s32.totalorder %s29, 3
      %s31 = scalar_select %p30, %s29, 3
      %p32 = scmp.gt.s32.totalorder %s23, 0
      %s33 = scalar_select %p32, %s23, 0
      %p34 = scmp.lt.s32.totalorder %s33, 3
      %s35 = scalar_select %p34, %s33, 3
      %s36 = ssub.s32 %s15, %s27
      %s37 = ssub.s32 %s31, %s35
      %s38 = sor.u32 %s36, %s37
      %p39 = scmp.eq.s32.totalorder %s38, 0
      %s41 = sadd.s32 %s40, 1
      %s42 = scalar_select %p39, %s40, %s41
      %p45 = pneg %p39
      %p46 = scmp.eq.s32.totalorder %s8, 9
      %p47 = por %p45, %p46
      %p48 = scmp.ne.s32.totalorder %s40, %s43
      %p49 = scmp.eq.s32.totalorder %s8, 0
      %p50 = por %p48, %p49
      %p51 = scmp.ne.s32.totalorder %s40, %s43
      %p52 = scmp.eq.s32.totalorder %s13, 9
      %p53 = por %p51, %p52
      %p54 = scmp.ne.s32.totalorder %s43, %s44
      %p55 = scmp.eq.s32.totalorder %s13, 0
      %p56 = por %p54, %p55
      %p57 = scmp.ne.s32.totalorder %s43, %s44
      %p58 = scmp.eq.s32.totalorder %s14, 9
      %p59 = por %p57, %p58
      %p61 = scmp.ne.s32.totalorder %s44, %s60
      %p62 = scmp.eq.s32.totalorder %s14, 0
      %p63 = por %p61, %p62
      %s64 = ssub.s32 %s15, %s27
      %s65 = ssub.s32 %s16, %s23
      %s66 = sor.u32 %s64, %s65
      %p67 = scmp.eq.s32.totalorder %s66, 0
      %s69 = sadd.s32 %s68, 1
      %s70 = scalar_select %p67, %s68, %s69
      %p73 = pneg %p67
      %p74 = scmp.eq.s32.totalorder %s8, 9
      %p75 = por %p73, %p74
      %p76 = scmp.ne.s32.totalorder %s68, %s71
      %p77 = scmp.eq.s32.totalorder %s8, 0
      %p78 = por %p76, %p77
      %p79 = scmp.ne.s32.totalorder %s68, %s71
      %p80 = scmp.eq.s32.totalorder %s13, 9
      %p81 = por %p79, %p80
      %p82 = scmp.ne.s32.totalorder %s71, %s72
      %p83 = scmp.eq.s32.totalorder %s13, 0
      %p84 = por %p82, %p83
      %p85 = scmp.ne.s32.totalorder %s71, %s72
      %p86 = scmp.eq.s32.totalorder %s14, 9
      %p87 = por %p85, %p86
      %p89 = scmp.ne.s32.totalorder %s72, %s88
      %p90 = scmp.eq.s32.totalorder %s14, 0
      %p91 = por %p89, %p90
      %s92 = ssub.s32 %s15, %s27
      %s93 = ssub.s32 %s16, %s23
      %s94 = sor.u32 %s92, %s93
      %p95 = scmp.eq.s32.totalorder %s94, 0
      %s97 = sadd.s32 %s96, 1
      %s98 = scalar_select %p95, %s96, %s97
      %p101 = pneg %p95
      %p102 = scmp.eq.s32.totalorder %s8, 9
      %p103 = por %p101, %p102
      %p104 = scmp.ne.s32.totalorder %s96, %s99
      %p105 = scmp.eq.s32.totalorder %s8, 0
      %p106 = por %p104, %p105
      %p107 = scmp.ne.s32.totalorder %s96, %s99
      %p108 = scmp.eq.s32.totalorder %s13, 9
      %p109 = por %p107, %p108
      %p110 = scmp.ne.s32.totalorder %s99, %s100
      %p111 = scmp.eq.s32.totalorder %s13, 0
      %p112 = por %p110, %p111
      %p113 = scmp.ne.s32.totalorder %s99, %s100
      %p114 = scmp.eq.s32.totalorder %s14, 9
      %p115 = por %p113, %p114
      %p117 = scmp.ne.s32.totalorder %s100, %s116
      %p118 = scmp.eq.s32.totalorder %s14, 0
      %p119 = por %p117, %p118
      %p120 = scmp.le.s32.totalorder 1, %s8
      %p121 = scmp.lt.s32.totalorder %s8, 11
      %p122 = pnand %p120, %p121
      %p123 = pneg %p122
      // Predicated region
      $region9: #{up2_forward.3} parent=5 // pred_check
        _
      $region10: #{up2_forward.3} parent=5 // pred_check_branch
        %125 = sbr.rel (%p122) target = $region12
      $region11: #{up2_forward.3} parent=5 // pred_region
        %s126 = ssub.s32 %s8, 1
      $region12: #{up2_forward.3} parent=5 // pred_fallthru
        _
      %p127 = scmp.lt.s32.totalorder %s8, 10
      // Predicated region
      $region13: #{up2_forward.3} parent=5 // pred_check
        %p128 = pneg %p127
      $region14: #{up2_forward.3} parent=5 // pred_check_branch
        %130 = sbr.rel (%p128) target = $region16
      $region15: #{up2_forward.3} parent=5 // pred_region
        // Predicated region
        $region17: #{up2_forward.3} parent=15 // pred_check
          %p131 = pneg %p50
        $region18: #{up2_forward.3} parent=15 // pred_check_branch
          %133 = sbr.rel (%p131) target = $region20
        $region19: #{up2_forward.3} parent=15 // pred_region
          %s134 = sand.u32 %s40, 1
          %s135 = sand.u32 %s40, 1
          %s136 = smul.addr %s135, 128
          %s137 = scalar_lea.vmem [#allocation2], %s136
          %p138 = scmp.gt.s32.totalorder %s16, 0
          %s139 = scalar_select %p138, %s16, 0
          %p140 = scmp.lt.s32.totalorder %s139, 3
          %s141 = scalar_select %p140, %s139, 3
          %s142 = smul.addr %s15, 64
          %s143 = sadd.s32 %s141, %s142
          %s144 = smul.addr %s143, 8
          %s145 = scalar_lea.vmem %s0, %s144
          // Predicated region
          $region21: #{up2_forward.3} parent=19 // pred_check
            _
          $region22: #{up2_forward.3} parent=19 // pred_check_branch
            %147 = sbr.rel (0) target = $region24
          $region23: #{up2_forward.3} parent=19 // pred_region
            // Predicated region
            $region25: #{up2_forward.3} parent=23 // pred_check
              _
            $region26: #{up2_forward.3} parent=23 // pred_check_branch
              %149 = sbr.rel (0) target = $region28
            $region27: #{up2_forward.3} parent=23 // pred_region
              // Predicated region
              $region40: #{up2_forward.3} parent=27 // pred_check
                _
              $region41: #{up2_forward.3} parent=27 // pred_check_branch
                %195 = sbr.rel (0) target = $region43
              $region42: #{up2_forward.3} parent=27 // pred_region
                loop: start=0, step=1, limit=1
                $region44: #{up2_forward.3} parent=42 // loop_pre_header
                  _
                $region45: #{up2_forward.3} parent=42 // loop_header
                  %s197 = sphi 0, %s201
                  %p198 = scmp.ge.s32.totalorder %s197, 1
                  %s202 = sphi %s145, %s145
                  %s203 = sphi %s137, %s137
                $region46: #{up2_forward.3} parent=42 // loop_header_branch
                  %200 = sbr.rel (%p198) target = $region50
                $region47: #{up2_forward.3} parent=42 // loop_body
                  %v204 = vld [vmem:[%s202] sm:$0xff]
                  %205 = vst [vmem:[%s203] sm:$0xff] %v204
                  %v206 = vld [vmem:[%s202 + $0x20] sm:$0xff]
                  %207 = vst [vmem:[%s203 + $0x8] sm:$0xff] %v206
                  %v208 = vld [vmem:[%s202 + $0x40] sm:$0xff]
                  %209 = vst [vmem:[%s203 + $0x10] sm:$0xff] %v208
                  %v210 = vld [vmem:[%s202 + $0x60] sm:$0xff]
                  %211 = vst [vmem:[%s203 + $0x18] sm:$0xff] %v210
                  %v212 = vld [vmem:[%s202 + $0x80] sm:$0xff]
                  %213 = vst [vmem:[%s203 + $0x20] sm:$0xff] %v212
                  %v214 = vld [vmem:[%s202 + $0xa0] sm:$0xff]
                  %215 = vst [vmem:[%s203 + $0x28] sm:$0xff] %v214
                  %v216 = vld [vmem:[%s202 + $0xc0] sm:$0xff]
                  %217 = vst [vmem:[%s203 + $0x30] sm:$0xff] %v216
                  %v218 = vld [vmem:[%s202 + $0xe0] sm:$0xff]
                  %219 = vst [vmem:[%s203 + $0x38] sm:$0xff] %v218
                  %v220 = vld [vmem:[%s202 + $0x100] sm:$0xff]
                  %221 = vst [vmem:[%s203 + $0x40] sm:$0xff] %v220
                  %v222 = vld [vmem:[%s202 + $0x120] sm:$0xff]
                  %223 = vst [vmem:[%s203 + $0x48] sm:$0xff] %v222
                  %v224 = vld [vmem:[%s202 + $0x140] sm:$0xff]
                  %225 = vst [vmem:[%s203 + $0x50] sm:$0xff] %v224
                  %v226 = vld [vmem:[%s202 + $0x160] sm:$0xff]
                  %227 = vst [vmem:[%s203 + $0x58] sm:$0xff] %v226
                  %v228 = vld [vmem:[%s202 + $0x180] sm:$0xff]
                  %229 = vst [vmem:[%s203 + $0x60] sm:$0xff] %v228
                  %v230 = vld [vmem:[%s202 + $0x1a0] sm:$0xff]
                  %231 = vst [vmem:[%s203 + $0x68] sm:$0xff] %v230
                  %v232 = vld [vmem:[%s202 + $0x1c0] sm:$0xff]
                  %233 = vst [vmem:[%s203 + $0x70] sm:$0xff] %v232
                  %v234 = vld [vmem:[%s202 + $0x1e0] sm:$0xff]
                  %235 = vst [vmem:[%s203 + $0x78] sm:$0xff] %v234
                $region48: #{up2_forward.3} parent=42 // loop_footer
                  %s201 = sadd.s32 1, %s197
                $region49: #{up2_forward.3} parent=42 // loop_footer_branch
                  %196 = sbr.rel target = $region45
                $region50: #{up2_forward.3} parent=42 // loop_exit
                  _
              $region43: #{up2_forward.3} parent=27 // pred_fallthru
                _
              // Predicated region
              $region51: #{up2_forward.3} parent=27 // pred_check
                _
              $region52: #{up2_forward.3} parent=27 // pred_check_branch
                %237 = sbr.rel target = $region54
              $region53: #{up2_forward.3} parent=27 // pred_region
                _
              $region54: #{up2_forward.3} parent=27 // pred_fallthru
                _
            $region28: #{up2_forward.3} parent=23 // pred_fallthru
              _
            // Predicated region
            $region29: #{up2_forward.3} parent=23 // pred_check
              _
            $region30: #{up2_forward.3} parent=23 // pred_check_branch
              %151 = sbr.rel target = $region32
            $region31: #{up2_forward.3} parent=23 // pred_region
              %s153 = ssub.s32 256, 1
              loop: start=0, step=1, limit=1
              $region33: #{up2_forward.3} parent=31 // loop_pre_header
                _
              $region34: #{up2_forward.3} parent=31 // loop_header
                %s155 = sphi 0, %s159
                %p156 = scmp.ge.s32.totalorder %s155, 1
                %s160 = sphi %s145, %s145
                %s161 = sphi %s137, %s137
              $region35: #{up2_forward.3} parent=31 // loop_header_branch
                %158 = sbr.rel (%p156) target = $region39
              $region36: #{up2_forward.3} parent=31 // loop_body
                %v162 = vld [vmem:[%s160] sm:%s153]
                %163 = vst [vmem:[%s161] sm:%s153] %v162
                %v164 = vld [vmem:[%s160 + $0x20] sm:%s153]
                %165 = vst [vmem:[%s161 + $0x8] sm:%s153] %v164
                %v166 = vld [vmem:[%s160 + $0x40] sm:%s153]
                %167 = vst [vmem:[%s161 + $0x10] sm:%s153] %v166
                %v168 = vld [vmem:[%s160 + $0x60] sm:%s153]
                %169 = vst [vmem:[%s161 + $0x18] sm:%s153] %v168
                %v170 = vld [vmem:[%s160 + $0x80] sm:%s153]
                %171 = vst [vmem:[%s161 + $0x20] sm:%s153] %v170
                %v172 = vld [vmem:[%s160 + $0xa0] sm:%s153]
                %173 = vst [vmem:[%s161 + $0x28] sm:%s153] %v172
                %v174 = vld [vmem:[%s160 + $0xc0] sm:%s153]
                %175 = vst [vmem:[%s161 + $0x30] sm:%s153] %v174
                %v176 = vld [vmem:[%s160 + $0xe0] sm:%s153]
                %177 = vst [vmem:[%s161 + $0x38] sm:%s153] %v176
                %v178 = vld [vmem:[%s160 + $0x100] sm:%s153]
                %179 = vst [vmem:[%s161 + $0x40] sm:%s153] %v178
                %v180 = vld [vmem:[%s160 + $0x120] sm:%s153]
                %181 = vst [vmem:[%s161 + $0x48] sm:%s153] %v180
                %v182 = vld [vmem:[%s160 + $0x140] sm:%s153]
                %183 = vst [vmem:[%s161 + $0x50] sm:%s153] %v182
                %v184 = vld [vmem:[%s160 + $0x160] sm:%s153]
                %185 = vst [vmem:[%s161 + $0x58] sm:%s153] %v184
                %v186 = vld [vmem:[%s160 + $0x180] sm:%s153]
                %187 = vst [vmem:[%s161 + $0x60] sm:%s153] %v186
                %v188 = vld [vmem:[%s160 + $0x1a0] sm:%s153]
                %189 = vst [vmem:[%s161 + $0x68] sm:%s153] %v188
                %v190 = vld [vmem:[%s160 + $0x1c0] sm:%s153]
                %191 = vst [vmem:[%s161 + $0x70] sm:%s153] %v190
                %v192 = vld [vmem:[%s160 + $0x1e0] sm:%s153]
                %193 = vst [vmem:[%s161 + $0x78] sm:%s153] %v192
              $region37: #{up2_forward.3} parent=31 // loop_footer
                %s159 = sadd.s32 1, %s155
              $region38: #{up2_forward.3} parent=31 // loop_footer_branch
                %154 = sbr.rel target = $region34
              $region39: #{up2_forward.3} parent=31 // loop_exit
                _
            $region32: #{up2_forward.3} parent=23 // pred_fallthru
              _
          $region24: #{up2_forward.3} parent=19 // pred_fallthru
            _
          %238 = vnop
        $region20: #{up2_forward.3} parent=15 // pred_fallthru
          _
        // Predicated region
        $region55: #{up2_forward.3} parent=15 // pred_check
          %p239 = pneg %p78
        $region56: #{up2_forward.3} parent=15 // pred_check_branch
          %241 = sbr.rel (%p239) target = $region58
        $region57: #{up2_forward.3} parent=15 // pred_region
          %s242 = sand.u32 %s68, 1
          %s243 = sand.u32 %s68, 1
          %s244 = smul.addr %s243, 96
          %s245 = scalar_lea.vmem [#allocation3], %s244
          %s246 = smul.addr %s16, 3
          %s247 = smul.addr %s15, 60
          %s248 = sadd.s32 %s246, %s247
          %s249 = smul.addr %s248, 8
          %s250 = scalar_lea.vmem %s1, %s249
          // Predicated region
          $region59: #{up2_forward.3} parent=57 // pred_check
            _
          $region60: #{up2_forward.3} parent=57 // pred_check_branch
            %252 = sbr.rel (0) target = $region62
          $region61: #{up2_forward.3} parent=57 // pred_region
            // Predicated region
            $region63: #{up2_forward.3} parent=61 // pred_check
              _
            $region64: #{up2_forward.3} parent=61 // pred_check_branch
              %254 = sbr.rel (0) target = $region66
            $region65: #{up2_forward.3} parent=61 // pred_region
              // Predicated region
              $region78: #{up2_forward.3} parent=65 // pred_check
                _
              $region79: #{up2_forward.3} parent=65 // pred_check_branch
                %292 = sbr.rel (0) target = $region81
              $region80: #{up2_forward.3} parent=65 // pred_region
                loop: start=0, step=1, limit=1
                $region82: #{up2_forward.3} parent=80 // loop_pre_header
                  _
                $region83: #{up2_forward.3} parent=80 // loop_header
                  %s294 = sphi 0, %s298
                  %p295 = scmp.ge.s32.totalorder %s294, 1
                  %s299 = sphi %s250, %s250
                  %s300 = sphi %s245, %s245
                $region84: #{up2_forward.3} parent=80 // loop_header_branch
                  %297 = sbr.rel (%p295) target = $region88
                $region85: #{up2_forward.3} parent=80 // loop_body
                  %v301 = vld [vmem:[%s299] sm:$0xff]
                  %302 = vst [vmem:[%s300] sm:$0xff] %v301
                  %v303 = vld [vmem:[%s299 + $0x8] sm:$0xff]
                  %304 = vst [vmem:[%s300 + $0x8] sm:$0xff] %v303
                  %v305 = vld [vmem:[%s299 + $0x10] sm:$0xff]
                  %306 = vst [vmem:[%s300 + $0x10] sm:$0xff] %v305
                  %v307 = vld [vmem:[%s299 + $0x78] sm:$0xff]
                  %308 = vst [vmem:[%s300 + $0x18] sm:$0xff] %v307
                  %v309 = vld [vmem:[%s299 + $0x80] sm:$0xff]
                  %310 = vst [vmem:[%s300 + $0x20] sm:$0xff] %v309
                  %v311 = vld [vmem:[%s299 + $0x88] sm:$0xff]
                  %312 = vst [vmem:[%s300 + $0x28] sm:$0xff] %v311
                  %v313 = vld [vmem:[%s299 + $0xf0] sm:$0xff]
                  %314 = vst [vmem:[%s300 + $0x30] sm:$0xff] %v313
                  %v315 = vld [vmem:[%s299 + $0xf8] sm:$0xff]
                  %316 = vst [vmem:[%s300 + $0x38] sm:$0xff] %v315
                  %v317 = vld [vmem:[%s299 + $0x100] sm:$0xff]
                  %318 = vst [vmem:[%s300 + $0x40] sm:$0xff] %v317
                  %v319 = vld [vmem:[%s299 + $0x168] sm:$0xff]
                  %320 = vst [vmem:[%s300 + $0x48] sm:$0xff] %v319
                  %v321 = vld [vmem:[%s299 + $0x170] sm:$0xff]
                  %322 = vst [vmem:[%s300 + $0x50] sm:$0xff] %v321
                  %v323 = vld [vmem:[%s299 + $0x178] sm:$0xff]
                  %324 = vst [vmem:[%s300 + $0x58] sm:$0xff] %v323
                $region86: #{up2_forward.3} parent=80 // loop_footer
                  %s298 = sadd.s32 1, %s294
                $region87: #{up2_forward.3} parent=80 // loop_footer_branch
                  %293 = sbr.rel target = $region83
                $region88: #{up2_forward.3} parent=80 // loop_exit
                  _
              $region81: #{up2_forward.3} parent=65 // pred_fallthru
                _
              // Predicated region
              $region89: #{up2_forward.3} parent=65 // pred_check
                _
              $region90: #{up2_forward.3} parent=65 // pred_check_branch
                %326 = sbr.rel target = $region92
              $region91: #{up2_forward.3} parent=65 // pred_region
                _
              $region92: #{up2_forward.3} parent=65 // pred_fallthru
                _
            $region66: #{up2_forward.3} parent=61 // pred_fallthru
              _
            // Predicated region
            $region67: #{up2_forward.3} parent=61 // pred_check
              _
            $region68: #{up2_forward.3} parent=61 // pred_check_branch
              %256 = sbr.rel target = $region70
            $region69: #{up2_forward.3} parent=61 // pred_region
              %s258 = ssub.s32 256, 1
              loop: start=0, step=1, limit=1
              $region71: #{up2_forward.3} parent=69 // loop_pre_header
                _
              $region72: #{up2_forward.3} parent=69 // loop_header
                %s260 = sphi 0, %s264
                %p261 = scmp.ge.s32.totalorder %s260, 1
                %s265 = sphi %s250, %s250
                %s266 = sphi %s245, %s245
              $region73: #{up2_forward.3} parent=69 // loop_header_branch
                %263 = sbr.rel (%p261) target = $region77
              $region74: #{up2_forward.3} parent=69 // loop_body
                %v267 = vld [vmem:[%s265] sm:%s258]
                %268 = vst [vmem:[%s266] sm:%s258] %v267
                %v269 = vld [vmem:[%s265 + $0x8] sm:%s258]
                %270 = vst [vmem:[%s266 + $0x8] sm:%s258] %v269
                %v271 = vld [vmem:[%s265 + $0x10] sm:%s258]
                %272 = vst [vmem:[%s266 + $0x10] sm:%s258] %v271
                %v273 = vld [vmem:[%s265 + $0x78] sm:%s258]
                %274 = vst [vmem:[%s266 + $0x18] sm:%s258] %v273
                %v275 = vld [vmem:[%s265 + $0x80] sm:%s258]
                %276 = vst [vmem:[%s266 + $0x20] sm:%s258] %v275
                %v277 = vld [vmem:[%s265 + $0x88] sm:%s258]
                %278 = vst [vmem:[%s266 + $0x28] sm:%s258] %v277
                %v279 = vld [vmem:[%s265 + $0xf0] sm:%s258]
                %280 = vst [vmem:[%s266 + $0x30] sm:%s258] %v279
                %v281 = vld [vmem:[%s265 + $0xf8] sm:%s258]
                %282 = vst [vmem:[%s266 + $0x38] sm:%s258] %v281
                %v283 = vld [vmem:[%s265 + $0x100] sm:%s258]
                %284 = vst [vmem:[%s266 + $0x40] sm:%s258] %v283
                %v285 = vld [vmem:[%s265 + $0x168] sm:%s258]
                %286 = vst [vmem:[%s266 + $0x48] sm:%s258] %v285
                %v287 = vld [vmem:[%s265 + $0x170] sm:%s258]
                %288 = vst [vmem:[%s266 + $0x50] sm:%s258] %v287
                %v289 = vld [vmem:[%s265 + $0x178] sm:%s258]
                %290 = vst [vmem:[%s266 + $0x58] sm:%s258] %v289
              $region75: #{up2_forward.3} parent=69 // loop_footer
                %s264 = sadd.s32 1, %s260
              $region76: #{up2_forward.3} parent=69 // loop_footer_branch
                %259 = sbr.rel target = $region72
              $region77: #{up2_forward.3} parent=69 // loop_exit
                _
            $region70: #{up2_forward.3} parent=61 // pred_fallthru
              _
          $region62: #{up2_forward.3} parent=57 // pred_fallthru
            _
          %327 = vnop
        $region58: #{up2_forward.3} parent=15 // pred_fallthru
          _
      $region16: #{up2_forward.3} parent=5 // pred_fallthru
        _
      %p328 = scmp.le.s32.totalorder 1, %s8
      %p329 = scmp.lt.s32.totalorder %s8, 11
      %p330 = pnand %p328, %p329
      %p331 = pneg %p330
      // Predicated region
      $region93: #{up2_forward.3} parent=5 // pred_check
        _
      $region94: #{up2_forward.3} parent=5 // pred_check_branch
        %333 = sbr.rel (%p330) target = $region96
      $region95: #{up2_forward.3} parent=5 // pred_region
        %s334 = ssub.s32 %s8, 1
        %s335 = sand.u32 %s43, 1
        %s336 = sand.u32 %s43, 1
        %s337 = smul.addr %s336, 128
        %s338 = scalar_lea.vmem [#allocation2], %s337
        // Predicated region
        $region97: #{up2_forward.3} parent=95 // pred_check
          %p339 = pneg %p56
        $region98: #{up2_forward.3} parent=95 // pred_check_branch
          %341 = sbr.rel (%p339) target = $region100
        $region99: #{up2_forward.3} parent=95 // pred_region
          _
        $region100: #{up2_forward.3} parent=95 // pred_fallthru
          _
        %s342 = sand.u32 %s71, 1
        %s343 = sand.u32 %s71, 1
        %s344 = smul.addr %s343, 96
        %s345 = scalar_lea.vmem [#allocation3], %s344
        // Predicated region
        $region101: #{up2_forward.3} parent=95 // pred_check
          %p346 = pneg %p84
        $region102: #{up2_forward.3} parent=95 // pred_check_branch
          %348 = sbr.rel (%p346) target = $region104
        $region103: #{up2_forward.3} parent=95 // pred_region
          _
        $region104: #{up2_forward.3} parent=95 // pred_fallthru
          _
        %s349 = sand.u32 %s43, 1
        %s350 = sand.u32 %s43, 1
        %s351 = smul.addr %s350, 128
        %s352 = scalar_lea.vmem [#allocation2], %s351
        %p353 = pneg %p56
        %p354 = pneg %p53
        %s355 = sand.u32 %s71, 1
        %s356 = sand.u32 %s71, 1
        %s357 = smul.addr %s356, 96
        %s358 = scalar_lea.vmem [#allocation3], %s357
        %p359 = pneg %p84
        %p360 = pneg %p81
        %p361 = pneg %p112
        %p362 = pneg %p109
        %s363 = sand.u32 %s99, 1
        %s364 = sand.u32 %s99, 1
        %s365 = smul.addr %s364, 192
        %s366 = scalar_lea.vmem [#allocation4], %s365
        %p367 = scmp.gt.s32.totalorder %s18, 0
        %s368 = scalar_select %p367, %s18, 0
        %p369 = scmp.lt.s32.totalorder %s368, 3
        %s370 = scalar_select %p369, %s368, 3
        %p371 = scmp.ge.s32.totalorder %s18, 0
        %p372 = scmp.lt.s32.totalorder %s18, 4
        %p373 = pnand %p371, %p372
        %p374 = pneg %p373
        %vm375 = vcmask 138240
        %376 = vst.msk [vmem:[%s366] sm:$0xff] %vm375, 0.0
        %377 = vst.msk [vmem:[%s366 + $0x8] sm:$0xff] %vm375, 0.0
        %vm378 = vcmask 131072
        %379 = vst.msk [vmem:[%s366 + $0x10] sm:$0x1] %vm378, 0.0
        %380 = vst.msk [vmem:[%s366 + $0x18] sm:$0xff] %vm375, 0.0
        %381 = vst.msk [vmem:[%s366 + $0x20] sm:$0xff] %vm375, 0.0
        %382 = vst.msk [vmem:[%s366 + $0x28] sm:$0x1] %vm378, 0.0
        %383 = vst.msk [vmem:[%s366 + $0x30] sm:$0xff] %vm375, 0.0
        %384 = vst.msk [vmem:[%s366 + $0x38] sm:$0xff] %vm375, 0.0
        %385 = vst.msk [vmem:[%s366 + $0x40] sm:$0x1] %vm378, 0.0
        %386 = vst.msk [vmem:[%s366 + $0x48] sm:$0xff] %vm375, 0.0
        %387 = vst.msk [vmem:[%s366 + $0x50] sm:$0xff] %vm375, 0.0
        %388 = vst.msk [vmem:[%s366 + $0x58] sm:$0x1] %vm378, 0.0
        // Predicated region
        $region105: #{up2_forward.3} parent=95 // pred_check
          _
        $region106: #{up2_forward.3} parent=95 // pred_check_branch
          %390 = sbr.rel (%p373) target = $region108
        $region107: #{up2_forward.3} parent=95 // pred_region
          %v391 = vlaneseq
          %v392 = vshrl.u32 %v391, 7
          %v393 = vadd.s32 %v392, 8
          %v394 = vlaneseq
          %v395 = vand.u32 %v394, 127
          %v396 = vmul.u32 %v395, 2
          %vm397 = vcmp.eq.s32.totalorder %v392, %v396
          %vm398 = vcmp.eq.s32.totalorder %v393, %v396
          %v399 = vsel %vm397, 1, 0
          %v400 = vsel %vm398, 1, 0
          %v401 = vcvt.s32.f32 %v399
          %v402 = vcvt.s32.f32 %v400
          %v403 = vmul.u32 %v392, 2
          %vm404 = vcmp.eq.s32.totalorder %v395, %v403
          %v405 = vsel %vm404, 1, 0
          %v406 = vcvt.s32.f32 %v405
          %v407 = vld [vmem:[%s338] sm:$0xff]
          %v408 = vld [vmem:[%s338 + $0x8] sm:$0xff]
          %v409 = vld [vmem:[%s338 + $0x10] sm:$0xff]
          %v410 = vld [vmem:[%s338 + $0x18] sm:$0xff]
          %v411 = vadd.s32 %v403, 1
          %vm412 = vcmp.eq.s32.totalorder %v395, %v411
          %v413 = vsel %vm412, 1, 0
          %v414 = vcvt.s32.f32 %v413
          %s415 = scalar_lea.vmem %s338, 32 [#allocation2]
          %v416 = vld [vmem:[%s415] sm:$0xff]
          %v417 = vld [vmem:[%s415 + $0x8] sm:$0xff]
          %v418 = vld [vmem:[%s415 + $0x10] sm:$0xff]
          %v419 = vld [vmem:[%s415 + $0x18] sm:$0xff]
          %vm420 = vcmask 64512
          %v422 = vsel %vm420, %v416, 0
          %424 = vmatpush.msra.mxu0 0.0
          %425 = vmatpush.msra.mxu0 0.0
          %426 = vmatpush.msra.mxu0 0.0
          %427 = vmatpush.msra.mxu0 0.0
          %428 = vmatpush.msra.mxu0 0.0
          %429 = vmatpush.msra.mxu0 0.0
          %430 = vmatpush.msra.mxu0 0.0
          %431 = vmatpush.msra.mxu0 0.0
          %432 = vmatpush.msra.mxu0 0.0
          %433 = vmatpush.msra.mxu0 0.0
          %434 = vmatpush.msra.mxu0 0.0
          %435 = vmatpush.msra.mxu0 0.0
          %436 = vmatpush.msra.mxu0 0.0
          %437 = vmatpush.msra.mxu0 0.0
          %438 = vmatpush.msra.mxu0 0.0
          %439 = vmatpush.msra.mxu0 %v414
          %440 = vmatmul.f32.gmra.mxu0 %v422
          %v441 = vpop.f32.mrf.mxu0
          %v442 = vadd.f32 0.0, %v441
          %443 = vdwg.mxu0
          %v445 = vsel %vm420, %v417, 0
          %447 = vmatpush.msra.mxu0 0.0
          %448 = vmatpush.msra.mxu0 0.0
          %449 = vmatpush.msra.mxu0 0.0
          %450 = vmatpush.msra.mxu0 0.0
          %451 = vmatpush.msra.mxu0 0.0
          %452 = vmatpush.msra.mxu0 0.0
          %453 = vmatpush.msra.mxu0 0.0
          %454 = vmatpush.msra.mxu0 0.0
          %455 = vmatpush.msra.mxu0 0.0
          %456 = vmatpush.msra.mxu0 0.0
          %457 = vmatpush.msra.mxu0 0.0
          %458 = vmatpush.msra.mxu0 0.0
          %459 = vmatpush.msra.mxu0 0.0
          %460 = vmatpush.msra.mxu0 0.0
          %461 = vmatpush.msra.mxu0 0.0
          %462 = vmatpush.msra.mxu0 %v414
          %463 = vmatmul.f32.gmra.mxu0 %v445
          %v464 = vpop.f32.mrf.mxu0
          %v465 = vadd.f32 0.0, %v464
          %466 = vdwg.mxu0
          %v468 = vsel %vm420, %v418, 0
          %470 = vmatpush.msra.mxu0 0.0
          %471 = vmatpush.msra.mxu0 0.0
          %472 = vmatpush.msra.mxu0 0.0
          %473 = vmatpush.msra.mxu0 0.0
          %474 = vmatpush.msra.mxu0 0.0
          %475 = vmatpush.msra.mxu0 0.0
          %476 = vmatpush.msra.mxu0 0.0
          %477 = vmatpush.msra.mxu0 0.0
          %478 = vmatpush.msra.mxu0 0.0
          %479 = vmatpush.msra.mxu0 0.0
          %480 = vmatpush.msra.mxu0 0.0
          %481 = vmatpush.msra.mxu0 0.0
          %482 = vmatpush.msra.mxu0 0.0
          %483 = vmatpush.msra.mxu0 0.0
          %484 = vmatpush.msra.mxu0 0.0
          %485 = vmatpush.msra.mxu0 %v414
          %486 = vmatmul.f32.gmra.mxu0 %v468
          %v487 = vpop.f32.mrf.mxu0
          %v488 = vadd.f32 0.0, %v487
          %489 = vdwg.mxu0
          %v491 = vsel %vm420, %v419, 0
          %493 = vmatpush.msra.mxu0 0.0
          %494 = vmatpush.msra.mxu0 0.0
          %495 = vmatpush.msra.mxu0 0.0
          %496 = vmatpush.msra.mxu0 0.0
          %497 = vmatpush.msra.mxu0 0.0
          %498 = vmatpush.msra.mxu0 0.0
          %499 = vmatpush.msra.mxu0 0.0
          %500 = vmatpush.msra.mxu0 0.0
          %501 = vmatpush.msra.mxu0 0.0
          %502 = vmatpush.msra.mxu0 0.0
          %503 = vmatpush.msra.mxu0 0.0
          %504 = vmatpush.msra.mxu0 0.0
          %505 = vmatpush.msra.mxu0 0.0
          %506 = vmatpush.msra.mxu0 0.0
          %507 = vmatpush.msra.mxu0 0.0
          %508 = vmatpush.msra.mxu0 %v414
          %509 = vmatmul.f32.gmra.mxu0 %v491
          %v510 = vpop.f32.mrf.mxu0
          %v511 = vadd.f32 0.0, %v510
          %512 = vdwg.mxu0
          %v514 = vsel %vm420, %v407, 0
          %516 = vmatpush.msra.mxu0 0.0
          %517 = vmatpush.msra.mxu0 0.0
          %518 = vmatpush.msra.mxu0 0.0
          %519 = vmatpush.msra.mxu0 0.0
          %520 = vmatpush.msra.mxu0 0.0
          %521 = vmatpush.msra.mxu0 0.0
          %522 = vmatpush.msra.mxu0 0.0
          %523 = vmatpush.msra.mxu0 0.0
          %524 = vmatpush.msra.mxu0 0.0
          %525 = vmatpush.msra.mxu0 0.0
          %526 = vmatpush.msra.mxu0 0.0
          %527 = vmatpush.msra.mxu0 0.0
          %528 = vmatpush.msra.mxu0 0.0
          %529 = vmatpush.msra.mxu0 0.0
          %530 = vmatpush.msra.mxu0 0.0
          %531 = vmatpush.msra.mxu0 %v406
          %532 = vmatmul.f32.gmra.mxu0 %v514
          %v533 = vpop.f32.mrf.mxu0
          %v534 = vadd.f32 %v442, %v533
          %535 = vdwg.mxu0
          %v537 = vsel %vm420, %v408, 0
          %539 = vmatpush.msra.mxu0 0.0
          %540 = vmatpush.msra.mxu0 0.0
          %541 = vmatpush.msra.mxu0 0.0
          %542 = vmatpush.msra.mxu0 0.0
          %543 = vmatpush.msra.mxu0 0.0
          %544 = vmatpush.msra.mxu0 0.0
          %545 = vmatpush.msra.mxu0 0.0
          %546 = vmatpush.msra.mxu0 0.0
          %547 = vmatpush.msra.mxu0 0.0
          %548 = vmatpush.msra.mxu0 0.0
          %549 = vmatpush.msra.mxu0 0.0
          %550 = vmatpush.msra.mxu0 0.0
          %551 = vmatpush.msra.mxu0 0.0
          %552 = vmatpush.msra.mxu0 0.0
          %553 = vmatpush.msra.mxu0 0.0
          %554 = vmatpush.msra.mxu0 %v406
          %555 = vmatmul.f32.gmra.mxu0 %v537
          %v556 = vpop.f32.mrf.mxu0
          %v557 = vadd.f32 %v465, %v556
          %558 = vdwg.mxu0
          %v560 = vsel %vm420, %v409, 0
          %562 = vmatpush.msra.mxu0 0.0
          %563 = vmatpush.msra.mxu0 0.0
          %564 = vmatpush.msra.mxu0 0.0
          %565 = vmatpush.msra.mxu0 0.0
          %566 = vmatpush.msra.mxu0 0.0
          %567 = vmatpush.msra.mxu0 0.0
          %568 = vmatpush.msra.mxu0 0.0
          %569 = vmatpush.msra.mxu0 0.0
          %570 = vmatpush.msra.mxu0 0.0
          %571 = vmatpush.msra.mxu0 0.0
          %572 = vmatpush.msra.mxu0 0.0
          %573 = vmatpush.msra.mxu0 0.0
          %574 = vmatpush.msra.mxu0 0.0
          %575 = vmatpush.msra.mxu0 0.0
          %576 = vmatpush.msra.mxu0 0.0
          %577 = vmatpush.msra.mxu0 %v406
          %578 = vmatmul.f32.gmra.mxu0 %v560
          %v579 = vpop.f32.mrf.mxu0
          %v580 = vadd.f32 %v488, %v579
          %581 = vdwg.mxu0
          %v583 = vsel %vm420, %v410, 0
          %585 = vmatpush.msra.mxu0 0.0
          %586 = vmatpush.msra.mxu0 0.0
          %587 = vmatpush.msra.mxu0 0.0
          %588 = vmatpush.msra.mxu0 0.0
          %589 = vmatpush.msra.mxu0 0.0
          %590 = vmatpush.msra.mxu0 0.0
          %591 = vmatpush.msra.mxu0 0.0
          %592 = vmatpush.msra.mxu0 0.0
          %593 = vmatpush.msra.mxu0 0.0
          %594 = vmatpush.msra.mxu0 0.0
          %595 = vmatpush.msra.mxu0 0.0
          %596 = vmatpush.msra.mxu0 0.0
          %597 = vmatpush.msra.mxu0 0.0
          %598 = vmatpush.msra.mxu0 0.0
          %599 = vmatpush.msra.mxu0 0.0
          %600 = vmatpush.msra.mxu0 %v406
          %601 = vmatmul.f32.gmra.mxu0 %v583
          %v602 = vpop.f32.mrf.mxu0
          %v603 = vadd.f32 %v511, %v602
          %604 = vdwg.mxu0
          %v605 = vadd.s32 %v396, 1
          %vm606 = vcmp.eq.s32.totalorder %v392, %v605
          %vm607 = vcmp.eq.s32.totalorder %v393, %v605
          %v608 = vsel %vm606, 1, 0
          %v609 = vsel %vm607, 1, 0
          %v610 = vcvt.s32.f32 %v608
          %v611 = vcvt.s32.f32 %v609
          %s612 = scalar_lea.vmem %s338, 64 [#allocation2]
          %v613 = vld [vmem:[%s612] sm:$0xff]
          %v614 = vld [vmem:[%s612 + $0x8] sm:$0xff]
          %v615 = vld [vmem:[%s612 + $0x10] sm:$0xff]
          %v616 = vld [vmem:[%s612 + $0x18] sm:$0xff]
          %s617 = scalar_lea.vmem %s338, 96 [#allocation2]
          %v618 = vld [vmem:[%s617] sm:$0xff]
          %v619 = vld [vmem:[%s617 + $0x8] sm:$0xff]
          %v620 = vld [vmem:[%s617 + $0x10] sm:$0xff]
          %v621 = vld [vmem:[%s617 + $0x18] sm:$0xff]
          %v623 = vsel %vm420, %v618, 0
          %625 = vmatpush.msra.mxu0 0.0
          %626 = vmatpush.msra.mxu0 0.0
          %627 = vmatpush.msra.mxu0 0.0
          %628 = vmatpush.msra.mxu0 0.0
          %629 = vmatpush.msra.mxu0 0.0
          %630 = vmatpush.msra.mxu0 0.0
          %631 = vmatpush.msra.mxu0 0.0
          %632 = vmatpush.msra.mxu0 0.0
          %633 = vmatpush.msra.mxu0 0.0
          %634 = vmatpush.msra.mxu0 0.0
          %635 = vmatpush.msra.mxu0 0.0
          %636 = vmatpush.msra.mxu0 0.0
          %637 = vmatpush.msra.mxu0 0.0
          %638 = vmatpush.msra.mxu0 0.0
          %639 = vmatpush.msra.mxu0 0.0
          %640 = vmatpush.msra.mxu0 %v414
          %641 = vmatmul.f32.gmra.mxu0 %v623
          %v642 = vpop.f32.mrf.mxu0
          %v643 = vadd.f32 0.0, %v642
          %644 = vdwg.mxu0
          %v646 = vsel %vm420, %v619, 0
          %648 = vmatpush.msra.mxu0 0.0
          %649 = vmatpush.msra.mxu0 0.0
          %650 = vmatpush.msra.mxu0 0.0
          %651 = vmatpush.msra.mxu0 0.0
          %652 = vmatpush.msra.mxu0 0.0
          %653 = vmatpush.msra.mxu0 0.0
          %654 = vmatpush.msra.mxu0 0.0
          %655 = vmatpush.msra.mxu0 0.0
          %656 = vmatpush.msra.mxu0 0.0
          %657 = vmatpush.msra.mxu0 0.0
          %658 = vmatpush.msra.mxu0 0.0
          %659 = vmatpush.msra.mxu0 0.0
          %660 = vmatpush.msra.mxu0 0.0
          %661 = vmatpush.msra.mxu0 0.0
          %662 = vmatpush.msra.mxu0 0.0
          %663 = vmatpush.msra.mxu0 %v414
          %664 = vmatmul.f32.gmra.mxu0 %v646
          %v665 = vpop.f32.mrf.mxu0
          %v666 = vadd.f32 0.0, %v665
          %667 = vdwg.mxu0
          %v669 = vsel %vm420, %v620, 0
          %671 = vmatpush.msra.mxu0 0.0
          %672 = vmatpush.msra.mxu0 0.0
          %673 = vmatpush.msra.mxu0 0.0
          %674 = vmatpush.msra.mxu0 0.0
          %675 = vmatpush.msra.mxu0 0.0
          %676 = vmatpush.msra.mxu0 0.0
          %677 = vmatpush.msra.mxu0 0.0
          %678 = vmatpush.msra.mxu0 0.0
          %679 = vmatpush.msra.mxu0 0.0
          %680 = vmatpush.msra.mxu0 0.0
          %681 = vmatpush.msra.mxu0 0.0
          %682 = vmatpush.msra.mxu0 0.0
          %683 = vmatpush.msra.mxu0 0.0
          %684 = vmatpush.msra.mxu0 0.0
          %685 = vmatpush.msra.mxu0 0.0
          %686 = vmatpush.msra.mxu0 %v414
          %687 = vmatmul.f32.gmra.mxu0 %v669
          %v688 = vpop.f32.mrf.mxu0
          %v689 = vadd.f32 0.0, %v688
          %690 = vdwg.mxu0
          %v692 = vsel %vm420, %v621, 0
          %694 = vmatpush.msra.mxu0 0.0
          %695 = vmatpush.msra.mxu0 0.0
          %696 = vmatpush.msra.mxu0 0.0
          %697 = vmatpush.msra.mxu0 0.0
          %698 = vmatpush.msra.mxu0 0.0
          %699 = vmatpush.msra.mxu0 0.0
          %700 = vmatpush.msra.mxu0 0.0
          %701 = vmatpush.msra.mxu0 0.0
          %702 = vmatpush.msra.mxu0 0.0
          %703 = vmatpush.msra.mxu0 0.0
          %704 = vmatpush.msra.mxu0 0.0
          %705 = vmatpush.msra.mxu0 0.0
          %706 = vmatpush.msra.mxu0 0.0
          %707 = vmatpush.msra.mxu0 0.0
          %708 = vmatpush.msra.mxu0 0.0
          %709 = vmatpush.msra.mxu0 %v414
          %710 = vmatmul.f32.gmra.mxu0 %v692
          %v711 = vpop.f32.mrf.mxu0
          %v712 = vadd.f32 0.0, %v711
          %713 = vdwg.mxu0
          %v715 = vsel %vm420, %v613, 0
          %717 = vmatpush.msra.mxu0 0.0
          %718 = vmatpush.msra.mxu0 0.0
          %719 = vmatpush.msra.mxu0 0.0
          %720 = vmatpush.msra.mxu0 0.0
          %721 = vmatpush.msra.mxu0 0.0
          %722 = vmatpush.msra.mxu0 0.0
          %723 = vmatpush.msra.mxu0 0.0
          %724 = vmatpush.msra.mxu0 0.0
          %725 = vmatpush.msra.mxu0 0.0
          %726 = vmatpush.msra.mxu0 0.0
          %727 = vmatpush.msra.mxu0 0.0
          %728 = vmatpush.msra.mxu0 0.0
          %729 = vmatpush.msra.mxu0 0.0
          %730 = vmatpush.msra.mxu0 0.0
          %731 = vmatpush.msra.mxu0 0.0
          %732 = vmatpush.msra.mxu0 %v406
          %733 = vmatmul.f32.gmra.mxu0 %v715
          %v734 = vpop.f32.mrf.mxu0
          %v735 = vadd.f32 %v643, %v734
          %736 = vdwg.mxu0
          %v738 = vsel %vm420, %v614, 0
          %740 = vmatpush.msra.mxu0 0.0
          %741 = vmatpush.msra.mxu0 0.0
          %742 = vmatpush.msra.mxu0 0.0
          %743 = vmatpush.msra.mxu0 0.0
          %744 = vmatpush.msra.mxu0 0.0
          %745 = vmatpush.msra.mxu0 0.0
          %746 = vmatpush.msra.mxu0 0.0
          %747 = vmatpush.msra.mxu0 0.0
          %748 = vmatpush.msra.mxu0 0.0
          %749 = vmatpush.msra.mxu0 0.0
          %750 = vmatpush.msra.mxu0 0.0
          %751 = vmatpush.msra.mxu0 0.0
          %752 = vmatpush.msra.mxu0 0.0
          %753 = vmatpush.msra.mxu0 0.0
          %754 = vmatpush.msra.mxu0 0.0
          %755 = vmatpush.msra.mxu0 %v406
          %756 = vmatmul.f32.gmra.mxu0 %v738
          %v757 = vpop.f32.mrf.mxu0
          %v758 = vadd.f32 %v666, %v757
          %759 = vdwg.mxu0
          %v761 = vsel %vm420, %v615, 0
          %763 = vmatpush.msra.mxu0 0.0
          %764 = vmatpush.msra.mxu0 0.0
          %765 = vmatpush.msra.mxu0 0.0
          %766 = vmatpush.msra.mxu0 0.0
          %767 = vmatpush.msra.mxu0 0.0
          %768 = vmatpush.msra.mxu0 0.0
          %769 = vmatpush.msra.mxu0 0.0
          %770 = vmatpush.msra.mxu0 0.0
          %771 = vmatpush.msra.mxu0 0.0
          %772 = vmatpush.msra.mxu0 0.0
          %773 = vmatpush.msra.mxu0 0.0
          %774 = vmatpush.msra.mxu0 0.0
          %775 = vmatpush.msra.mxu0 0.0
          %776 = vmatpush.msra.mxu0 0.0
          %777 = vmatpush.msra.mxu0 0.0
          %778 = vmatpush.msra.mxu0 %v406
          %779 = vmatmul.f32.gmra.mxu0 %v761
          %v780 = vpop.f32.mrf.mxu0
          %v781 = vadd.f32 %v689, %v780
          %782 = vdwg.mxu0
          %v784 = vsel %vm420, %v616, 0
          %786 = vmatpush.msra.mxu0 0.0
          %787 = vmatpush.msra.mxu0 0.0
          %788 = vmatpush.msra.mxu0 0.0
          %789 = vmatpush.msra.mxu0 0.0
          %790 = vmatpush.msra.mxu0 0.0
          %791 = vmatpush.msra.mxu0 0.0
          %792 = vmatpush.msra.mxu0 0.0
          %793 = vmatpush.msra.mxu0 0.0
          %794 = vmatpush.msra.mxu0 0.0
          %795 = vmatpush.msra.mxu0 0.0
          %796 = vmatpush.msra.mxu0 0.0
          %797 = vmatpush.msra.mxu0 0.0
          %798 = vmatpush.msra.mxu0 0.0
          %799 = vmatpush.msra.mxu0 0.0
          %800 = vmatpush.msra.mxu0 0.0
          %801 = vmatpush.msra.mxu0 %v406
          %802 = vmatmul.f32.gmra.mxu0 %v784
          %v803 = vpop.f32.mrf.mxu0
          %v804 = vadd.f32 %v712, %v803
          %805 = vdwg.mxu0
          %v807 = vsel %vm420, %v610, 0
          %v810 = vsel %vm420, %v611, 0
          %812 = vmatpush.msra.mxu0 0.0
          %813 = vmatpush.msra.mxu0 0.0
          %814 = vmatpush.msra.mxu0 0.0
          %815 = vmatpush.msra.mxu0 0.0
          %816 = vmatpush.msra.mxu0 0.0
          %817 = vmatpush.msra.mxu0 0.0
          %818 = vmatpush.msra.mxu0 0.0
          %819 = vmatpush.msra.mxu0 0.0
          %820 = vmatpush.msra.mxu0 0.0
          %821 = vmatpush.msra.mxu0 0.0
          %822 = vmatpush.msra.mxu0 0.0
          %823 = vmatpush.msra.mxu0 0.0
          %824 = vmatpush.msra.mxu0 0.0
          %825 = vmatpush.msra.mxu0 0.0
          %826 = vmatpush.msra.mxu0 0.0
          %827 = vmatpush.msra.mxu0 %v735
          %828 = vmatmul.f32.gmra.mxu0 %v807
          %v829 = vpop.f32.mrf.mxu0
          %v830 = vadd.f32 0.0, %v829
          %831 = vmatmul.f32.gmra.mxu0 %v810
          %v832 = vpop.f32.mrf.mxu0
          %v833 = vadd.f32 0.0, %v832
          %834 = vdwg.mxu0
          %835 = vmatpush.msra.mxu0 0.0
          %836 = vmatpush.msra.mxu0 0.0
          %837 = vmatpush.msra.mxu0 0.0
          %838 = vmatpush.msra.mxu0 0.0
          %839 = vmatpush.msra.mxu0 0.0
          %840 = vmatpush.msra.mxu0 0.0
          %841 = vmatpush.msra.mxu0 0.0
          %842 = vmatpush.msra.mxu0 0.0
          %843 = vmatpush.msra.mxu0 0.0
          %844 = vmatpush.msra.mxu0 0.0
          %845 = vmatpush.msra.mxu0 0.0
          %846 = vmatpush.msra.mxu0 0.0
          %847 = vmatpush.msra.mxu0 0.0
          %848 = vmatpush.msra.mxu0 0.0
          %849 = vmatpush.msra.mxu0 0.0
          %850 = vmatpush.msra.mxu0 %v758
          %851 = vmatmul.f32.gmra.mxu0 %v807
          %v852 = vpop.f32.mrf.mxu0
          %v853 = vadd.f32 0.0, %v852
          %854 = vmatmul.f32.gmra.mxu0 %v810
          %v855 = vpop.f32.mrf.mxu0
          %v856 = vadd.f32 0.0, %v855
          %857 = vdwg.mxu0
          %858 = vmatpush.msra.mxu0 0.0
          %859 = vmatpush.msra.mxu0 0.0
          %860 = vmatpush.msra.mxu0 0.0
          %861 = vmatpush.msra.mxu0 0.0
          %862 = vmatpush.msra.mxu0 0.0
          %863 = vmatpush.msra.mxu0 0.0
          %864 = vmatpush.msra.mxu0 0.0
          %865 = vmatpush.msra.mxu0 0.0
          %866 = vmatpush.msra.mxu0 0.0
          %867 = vmatpush.msra.mxu0 0.0
          %868 = vmatpush.msra.mxu0 0.0
          %869 = vmatpush.msra.mxu0 0.0
          %870 = vmatpush.msra.mxu0 0.0
          %871 = vmatpush.msra.mxu0 0.0
          %872 = vmatpush.msra.mxu0 0.0
          %873 = vmatpush.msra.mxu0 %v781
          %874 = vmatmul.f32.gmra.mxu0 %v807
          %v875 = vpop.f32.mrf.mxu0
          %v876 = vadd.f32 0.0, %v875
          %877 = vmatmul.f32.gmra.mxu0 %v810
          %v878 = vpop.f32.mrf.mxu0
          %v879 = vadd.f32 0.0, %v878
          %880 = vdwg.mxu0
          %881 = vmatpush.msra.mxu0 0.0
          %882 = vmatpush.msra.mxu0 0.0
          %883 = vmatpush.msra.mxu0 0.0
          %884 = vmatpush.msra.mxu0 0.0
          %885 = vmatpush.msra.mxu0 0.0
          %886 = vmatpush.msra.mxu0 0.0
          %887 = vmatpush.msra.mxu0 0.0
          %888 = vmatpush.msra.mxu0 0.0
          %889 = vmatpush.msra.mxu0 0.0
          %890 = vmatpush.msra.mxu0 0.0
          %891 = vmatpush.msra.mxu0 0.0
          %892 = vmatpush.msra.mxu0 0.0
          %893 = vmatpush.msra.mxu0 0.0
          %894 = vmatpush.msra.mxu0 0.0
          %895 = vmatpush.msra.mxu0 0.0
          %896 = vmatpush.msra.mxu0 %v804
          %897 = vmatmul.f32.gmra.mxu0 %v807
          %v898 = vpop.f32.mrf.mxu0
          %v899 = vadd.f32 0.0, %v898
          %900 = vmatmul.f32.gmra.mxu0 %v810
          %v901 = vpop.f32.mrf.mxu0
          %v902 = vadd.f32 0.0, %v901
          %903 = vdwg.mxu0
          %v905 = vsel %vm420, %v401, 0
          %v908 = vsel %vm420, %v402, 0
          %910 = vmatpush.msra.mxu0 0.0
          %911 = vmatpush.msra.mxu0 0.0
          %912 = vmatpush.msra.mxu0 0.0
          %913 = vmatpush.msra.mxu0 0.0
          %914 = vmatpush.msra.mxu0 0.0
          %915 = vmatpush.msra.mxu0 0.0
          %916 = vmatpush.msra.mxu0 0.0
          %917 = vmatpush.msra.mxu0 0.0
          %918 = vmatpush.msra.mxu0 0.0
          %919 = vmatpush.msra.mxu0 0.0
          %920 = vmatpush.msra.mxu0 0.0
          %921 = vmatpush.msra.mxu0 0.0
          %922 = vmatpush.msra.mxu0 0.0
          %923 = vmatpush.msra.mxu0 0.0
          %924 = vmatpush.msra.mxu0 0.0
          %925 = vmatpush.msra.mxu0 %v534
          %926 = vmatmul.f32.gmra.mxu0 %v905
          %v927 = vpop.f32.mrf.mxu0
          %v928 = vadd.f32 %v830, %v927
          %929 = vmatmul.f32.gmra.mxu0 %v908
          %v930 = vpop.f32.mrf.mxu0
          %v931 = vadd.f32 %v833, %v930
          %932 = vdwg.mxu0
          %933 = vmatpush.msra.mxu0 0.0
          %934 = vmatpush.msra.mxu0 0.0
          %935 = vmatpush.msra.mxu0 0.0
          %936 = vmatpush.msra.mxu0 0.0
          %937 = vmatpush.msra.mxu0 0.0
          %938 = vmatpush.msra.mxu0 0.0
          %939 = vmatpush.msra.mxu0 0.0
          %940 = vmatpush.msra.mxu0 0.0
          %941 = vmatpush.msra.mxu0 0.0
          %942 = vmatpush.msra.mxu0 0.0
          %943 = vmatpush.msra.mxu0 0.0
          %944 = vmatpush.msra.mxu0 0.0
          %945 = vmatpush.msra.mxu0 0.0
          %946 = vmatpush.msra.mxu0 0.0
          %947 = vmatpush.msra.mxu0 0.0
          %948 = vmatpush.msra.mxu0 %v557
          %949 = vmatmul.f32.gmra.mxu0 %v905
          %v950 = vpop.f32.mrf.mxu0
          %v951 = vadd.f32 %v853, %v950
          %952 = vmatmul.f32.gmra.mxu0 %v908
          %v953 = vpop.f32.mrf.mxu0
          %v954 = vadd.f32 %v856, %v953
          %955 = vdwg.mxu0
          %956 = vmatpush.msra.mxu0 0.0
          %957 = vmatpush.msra.mxu0 0.0
          %958 = vmatpush.msra.mxu0 0.0
          %959 = vmatpush.msra.mxu0 0.0
          %960 = vmatpush.msra.mxu0 0.0
          %961 = vmatpush.msra.mxu0 0.0
          %962 = vmatpush.msra.mxu0 0.0
          %963 = vmatpush.msra.mxu0 0.0
          %964 = vmatpush.msra.mxu0 0.0
          %965 = vmatpush.msra.mxu0 0.0
          %966 = vmatpush.msra.mxu0 0.0
          %967 = vmatpush.msra.mxu0 0.0
          %968 = vmatpush.msra.mxu0 0.0
          %969 = vmatpush.msra.mxu0 0.0
          %970 = vmatpush.msra.mxu0 0.0
          %971 = vmatpush.msra.mxu0 %v580
          %972 = vmatmul.f32.gmra.mxu0 %v905
          %v973 = vpop.f32.mrf.mxu0
          %v974 = vadd.f32 %v876, %v973
          %975 = vmatmul.f32.gmra.mxu0 %v908
          %v976 = vpop.f32.mrf.mxu0
          %v977 = vadd.f32 %v879, %v976
          %978 = vdwg.mxu0
          %979 = vmatpush.msra.mxu0 0.0
          %980 = vmatpush.msra.mxu0 0.0
          %981 = vmatpush.msra.mxu0 0.0
          %982 = vmatpush.msra.mxu0 0.0
          %983 = vmatpush.msra.mxu0 0.0
          %984 = vmatpush.msra.mxu0 0.0
          %985 = vmatpush.msra.mxu0 0.0
          %986 = vmatpush.msra.mxu0 0.0
          %987 = vmatpush.msra.mxu0 0.0
          %988 = vmatpush.msra.mxu0 0.0
          %989 = vmatpush.msra.mxu0 0.0
          %990 = vmatpush.msra.mxu0 0.0
          %991 = vmatpush.msra.mxu0 0.0
          %992 = vmatpush.msra.mxu0 0.0
          %993 = vmatpush.msra.mxu0 0.0
          %994 = vmatpush.msra.mxu0 %v603
          %995 = vmatmul.f32.gmra.mxu0 %v905
          %v996 = vpop.f32.mrf.mxu0
          %v997 = vadd.f32 %v899, %v996
          %998 = vmatmul.f32.gmra.mxu0 %v908
          %v999 = vpop.f32.mrf.mxu0
          %v1000 = vadd.f32 %v902, %v999
          %1001 = vdwg.mxu0
          %vm1002 = vcmask 130048
          %1003 = vst.msk [vmem:[%s366] sm:$0xff] %vm1002, %v928
          %1004 = vst.msk [vmem:[%s366 + $0x8] sm:$0xff] %vm1002, %v931
          %1005 = vst.msk [vmem:[%s366 + $0x18] sm:$0xff] %vm1002, %v951
          %1006 = vst.msk [vmem:[%s366 + $0x20] sm:$0xff] %vm1002, %v954
          %1007 = vst.msk [vmem:[%s366 + $0x30] sm:$0xff] %vm1002, %v974
          %1008 = vst.msk [vmem:[%s366 + $0x38] sm:$0xff] %vm1002, %v977
          %1009 = vst.msk [vmem:[%s366 + $0x48] sm:$0xff] %vm1002, %v997
          %1010 = vst.msk [vmem:[%s366 + $0x50] sm:$0xff] %vm1002, %v1000
        $region108: #{up2_forward.3} parent=95 // pred_fallthru
          _
        %v1011 = vld [vmem:[%s345] sm:$0xff]
        %v1012 = vld [vmem:[%s345 + $0x8] sm:$0xff]
        %v1013 = vld [vmem:[%s345 + $0x10] sm:$0x1]
        %v1014 = vld [vmem:[%s345 + $0x18] sm:$0xff]
        %v1015 = vld [vmem:[%s345 + $0x20] sm:$0xff]
        %v1016 = vld [vmem:[%s345 + $0x28] sm:$0x1]
        %v1017 = vld [vmem:[%s345 + $0x30] sm:$0xff]
        %v1018 = vld [vmem:[%s345 + $0x38] sm:$0xff]
        %v1019 = vld [vmem:[%s345 + $0x40] sm:$0x1]
        %v1020 = vld [vmem:[%s345 + $0x48] sm:$0xff]
        %v1021 = vld [vmem:[%s345 + $0x50] sm:$0xff]
        %v1022 = vld [vmem:[%s345 + $0x58] sm:$0x1]
        %s1023 = scalar_lea.vmem %s366, 96 [#allocation4]
        %1024 = vst.msk [vmem:[%s1023] sm:$0xff] %vm375, %v1011
        %1025 = vst.msk [vmem:[%s1023 + $0x8] sm:$0xff] %vm375, %v1012
        %1026 = vst.msk [vmem:[%s1023 + $0x10] sm:$0x1] %vm378, %v1013
        %1027 = vst.msk [vmem:[%s1023 + $0x18] sm:$0xff] %vm375, %v1014
        %1028 = vst.msk [vmem:[%s1023 + $0x20] sm:$0xff] %vm375, %v1015
        %1029 = vst.msk [vmem:[%s1023 + $0x28] sm:$0x1] %vm378, %v1016
        %1030 = vst.msk [vmem:[%s1023 + $0x30] sm:$0xff] %vm375, %v1017
        %1031 = vst.msk [vmem:[%s1023 + $0x38] sm:$0xff] %vm375, %v1018
        %1032 = vst.msk [vmem:[%s1023 + $0x40] sm:$0x1] %vm378, %v1019
        %1033 = vst.msk [vmem:[%s1023 + $0x48] sm:$0xff] %vm375, %v1020
        %1034 = vst.msk [vmem:[%s1023 + $0x50] sm:$0xff] %vm375, %v1021
        %1035 = vst.msk [vmem:[%s1023 + $0x58] sm:$0x1] %vm378, %v1022
        %s1036 = sand.u32 %s99, 1
        %s1037 = sand.u32 %s99, 1
        %s1038 = smul.addr %s1037, 192
        %s1039 = scalar_lea.vmem [#allocation4], %s1038
        // Predicated region
        $region109: #{up2_forward.3} parent=95 // pred_check
          %p1040 = pneg %p109
        $region110: #{up2_forward.3} parent=95 // pred_check_branch
          %1042 = sbr.rel (%p1040) target = $region112
        $region111: #{up2_forward.3} parent=95 // pred_region
          %s1043 = smul.addr %s18, 3
          %s1044 = smul.addr %s17, 120
          %s1045 = sadd.s32 %s1043, %s1044
          %s1046 = smul.addr %s1045, 8
          %s1047 = scalar_lea.vmem %s2, %s1046
          // Predicated region
          $region113: #{up2_forward.3} parent=111 // pred_check
            _
          $region114: #{up2_forward.3} parent=111 // pred_check_branch
            %1049 = sbr.rel (0) target = $region116
          $region115: #{up2_forward.3} parent=111 // pred_region
            // Predicated region
            $region117: #{up2_forward.3} parent=115 // pred_check
              _
            $region118: #{up2_forward.3} parent=115 // pred_check_branch
              %1051 = sbr.rel (0) target = $region120
            $region119: #{up2_forward.3} parent=115 // pred_region
              // Predicated region
              $region132: #{up2_forward.3} parent=119 // pred_check
                _
              $region133: #{up2_forward.3} parent=119 // pred_check_branch
                %1113 = sbr.rel (0) target = $region135
              $region134: #{up2_forward.3} parent=119 // pred_region
                loop: start=0, step=1, limit=1
                $region136: #{up2_forward.3} parent=134 // loop_pre_header
                  _
                $region137: #{up2_forward.3} parent=134 // loop_header
                  %s1115 = sphi 0, %s1119
                  %p1116 = scmp.ge.s32.totalorder %s1115, 1
                  %s1120 = sphi %s1039, %s1039
                  %s1121 = sphi %s1047, %s1047
                $region138: #{up2_forward.3} parent=134 // loop_header_branch
                  %1118 = sbr.rel (%p1116) target = $region142
                $region139: #{up2_forward.3} parent=134 // loop_body
                  %v1122 = vld [vmem:[%s1120] sm:$0xff]
                  %1123 = vst [vmem:[%s1121] sm:$0xff] %v1122
                  %v1124 = vld [vmem:[%s1120 + $0x8] sm:$0xff]
                  %1125 = vst [vmem:[%s1121 + $0x8] sm:$0xff] %v1124
                  %v1126 = vld [vmem:[%s1120 + $0x10] sm:$0xff]
                  %1127 = vst [vmem:[%s1121 + $0x10] sm:$0xff] %v1126
                  %v1128 = vld [vmem:[%s1120 + $0x18] sm:$0xff]
                  %1129 = vst [vmem:[%s1121 + $0x78] sm:$0xff] %v1128
                  %v1130 = vld [vmem:[%s1120 + $0x20] sm:$0xff]
                  %1131 = vst [vmem:[%s1121 + $0x80] sm:$0xff] %v1130
                  %v1132 = vld [vmem:[%s1120 + $0x28] sm:$0xff]
                  %1133 = vst [vmem:[%s1121 + $0x88] sm:$0xff] %v1132
                  %v1134 = vld [vmem:[%s1120 + $0x30] sm:$0xff]
                  %1135 = vst [vmem:[%s1121 + $0xf0] sm:$0xff] %v1134
                  %v1136 = vld [vmem:[%s1120 + $0x38] sm:$0xff]
                  %1137 = vst [vmem:[%s1121 + $0xf8] sm:$0xff] %v1136
                  %v1138 = vld [vmem:[%s1120 + $0x40] sm:$0xff]
                  %1139 = vst [vmem:[%s1121 + $0x100] sm:$0xff] %v1138
                  %v1140 = vld [vmem:[%s1120 + $0x48] sm:$0xff]
                  %1141 = vst [vmem:[%s1121 + $0x168] sm:$0xff] %v1140
                  %v1142 = vld [vmem:[%s1120 + $0x50] sm:$0xff]
                  %1143 = vst [vmem:[%s1121 + $0x170] sm:$0xff] %v1142
                  %v1144 = vld [vmem:[%s1120 + $0x58] sm:$0xff]
                  %1145 = vst [vmem:[%s1121 + $0x178] sm:$0xff] %v1144
                  %v1146 = vld [vmem:[%s1120 + $0x60] sm:$0xff]
                  %1147 = vst [vmem:[%s1121 + $0x1e0] sm:$0xff] %v1146
                  %v1148 = vld [vmem:[%s1120 + $0x68] sm:$0xff]
                  %1149 = vst [vmem:[%s1121 + $0x1e8] sm:$0xff] %v1148
                  %v1150 = vld [vmem:[%s1120 + $0x70] sm:$0xff]
                  %1151 = vst [vmem:[%s1121 + $0x1f0] sm:$0xff] %v1150
                  %v1152 = vld [vmem:[%s1120 + $0x78] sm:$0xff]
                  %1153 = vst [vmem:[%s1121 + $0x258] sm:$0xff] %v1152
                  %v1154 = vld [vmem:[%s1120 + $0x80] sm:$0xff]
                  %1155 = vst [vmem:[%s1121 + $0x260] sm:$0xff] %v1154
                  %v1156 = vld [vmem:[%s1120 + $0x88] sm:$0xff]
                  %1157 = vst [vmem:[%s1121 + $0x268] sm:$0xff] %v1156
                  %v1158 = vld [vmem:[%s1120 + $0x90] sm:$0xff]
                  %1159 = vst [vmem:[%s1121 + $0x2d0] sm:$0xff] %v1158
                  %v1160 = vld [vmem:[%s1120 + $0x98] sm:$0xff]
                  %1161 = vst [vmem:[%s1121 + $0x2d8] sm:$0xff] %v1160
                  %v1162 = vld [vmem:[%s1120 + $0xa0] sm:$0xff]
                  %1163 = vst [vmem:[%s1121 + $0x2e0] sm:$0xff] %v1162
                  %v1164 = vld [vmem:[%s1120 + $0xa8] sm:$0xff]
                  %1165 = vst [vmem:[%s1121 + $0x348] sm:$0xff] %v1164
                  %v1166 = vld [vmem:[%s1120 + $0xb0] sm:$0xff]
                  %1167 = vst [vmem:[%s1121 + $0x350] sm:$0xff] %v1166
                  %v1168 = vld [vmem:[%s1120 + $0xb8] sm:$0xff]
                  %1169 = vst [vmem:[%s1121 + $0x358] sm:$0xff] %v1168
                $region140: #{up2_forward.3} parent=134 // loop_footer
                  %s1119 = sadd.s32 1, %s1115
                $region141: #{up2_forward.3} parent=134 // loop_footer_branch
                  %1114 = sbr.rel target = $region137
                $region142: #{up2_forward.3} parent=134 // loop_exit
                  _
              $region135: #{up2_forward.3} parent=119 // pred_fallthru
                _
              // Predicated region
              $region143: #{up2_forward.3} parent=119 // pred_check
                _
              $region144: #{up2_forward.3} parent=119 // pred_check_branch
                %1171 = sbr.rel target = $region146
              $region145: #{up2_forward.3} parent=119 // pred_region
                _
              $region146: #{up2_forward.3} parent=119 // pred_fallthru
                _
            $region120: #{up2_forward.3} parent=115 // pred_fallthru
              _
            // Predicated region
            $region121: #{up2_forward.3} parent=115 // pred_check
              _
            $region122: #{up2_forward.3} parent=115 // pred_check_branch
              %1053 = sbr.rel target = $region124
            $region123: #{up2_forward.3} parent=115 // pred_region
              %s1055 = ssub.s32 256, 1
              loop: start=0, step=1, limit=1
              $region125: #{up2_forward.3} parent=123 // loop_pre_header
                _
              $region126: #{up2_forward.3} parent=123 // loop_header
                %s1057 = sphi 0, %s1061
                %p1058 = scmp.ge.s32.totalorder %s1057, 1
                %s1062 = sphi %s1039, %s1039
                %s1063 = sphi %s1047, %s1047
              $region127: #{up2_forward.3} parent=123 // loop_header_branch
                %1060 = sbr.rel (%p1058) target = $region131
              $region128: #{up2_forward.3} parent=123 // loop_body
                %v1064 = vld [vmem:[%s1062] sm:%s1055]
                %1065 = vst [vmem:[%s1063] sm:%s1055] %v1064
                %v1066 = vld [vmem:[%s1062 + $0x8] sm:%s1055]
                %1067 = vst [vmem:[%s1063 + $0x8] sm:%s1055] %v1066
                %v1068 = vld [vmem:[%s1062 + $0x10] sm:%s1055]
                %1069 = vst [vmem:[%s1063 + $0x10] sm:%s1055] %v1068
                %v1070 = vld [vmem:[%s1062 + $0x18] sm:%s1055]
                %1071 = vst [vmem:[%s1063 + $0x78] sm:%s1055] %v1070
                %v1072 = vld [vmem:[%s1062 + $0x20] sm:%s1055]
                %1073 = vst [vmem:[%s1063 + $0x80] sm:%s1055] %v1072
                %v1074 = vld [vmem:[%s1062 + $0x28] sm:%s1055]
                %1075 = vst [vmem:[%s1063 + $0x88] sm:%s1055] %v1074
                %v1076 = vld [vmem:[%s1062 + $0x30] sm:%s1055]
                %1077 = vst [vmem:[%s1063 + $0xf0] sm:%s1055] %v1076
                %v1078 = vld [vmem:[%s1062 + $0x38] sm:%s1055]
                %1079 = vst [vmem:[%s1063 + $0xf8] sm:%s1055] %v1078
                %v1080 = vld [vmem:[%s1062 + $0x40] sm:%s1055]
                %1081 = vst [vmem:[%s1063 + $0x100] sm:%s1055] %v1080
                %v1082 = vld [vmem:[%s1062 + $0x48] sm:%s1055]
                %1083 = vst [vmem:[%s1063 + $0x168] sm:%s1055] %v1082
                %v1084 = vld [vmem:[%s1062 + $0x50] sm:%s1055]
                %1085 = vst [vmem:[%s1063 + $0x170] sm:%s1055] %v1084
                %v1086 = vld [vmem:[%s1062 + $0x58] sm:%s1055]
                %1087 = vst [vmem:[%s1063 + $0x178] sm:%s1055] %v1086
                %v1088 = vld [vmem:[%s1062 + $0x60] sm:%s1055]
                %1089 = vst [vmem:[%s1063 + $0x1e0] sm:%s1055] %v1088
                %v1090 = vld [vmem:[%s1062 + $0x68] sm:%s1055]
                %1091 = vst [vmem:[%s1063 + $0x1e8] sm:%s1055] %v1090
                %v1092 = vld [vmem:[%s1062 + $0x70] sm:%s1055]
                %1093 = vst [vmem:[%s1063 + $0x1f0] sm:%s1055] %v1092
                %v1094 = vld [vmem:[%s1062 + $0x78] sm:%s1055]
                %1095 = vst [vmem:[%s1063 + $0x258] sm:%s1055] %v1094
                %v1096 = vld [vmem:[%s1062 + $0x80] sm:%s1055]
                %1097 = vst [vmem:[%s1063 + $0x260] sm:%s1055] %v1096
                %v1098 = vld [vmem:[%s1062 + $0x88] sm:%s1055]
                %1099 = vst [vmem:[%s1063 + $0x268] sm:%s1055] %v1098
                %v1100 = vld [vmem:[%s1062 + $0x90] sm:%s1055]
                %1101 = vst [vmem:[%s1063 + $0x2d0] sm:%s1055] %v1100
                %v1102 = vld [vmem:[%s1062 + $0x98] sm:%s1055]
                %1103 = vst [vmem:[%s1063 + $0x2d8] sm:%s1055] %v1102
                %v1104 = vld [vmem:[%s1062 + $0xa0] sm:%s1055]
                %1105 = vst [vmem:[%s1063 + $0x2e0] sm:%s1055] %v1104
                %v1106 = vld [vmem:[%s1062 + $0xa8] sm:%s1055]
                %1107 = vst [vmem:[%s1063 + $0x348] sm:%s1055] %v1106
                %v1108 = vld [vmem:[%s1062 + $0xb0] sm:%s1055]
                %1109 = vst [vmem:[%s1063 + $0x350] sm:%s1055] %v1108
                %v1110 = vld [vmem:[%s1062 + $0xb8] sm:%s1055]
                %1111 = vst [vmem:[%s1063 + $0x358] sm:%s1055] %v1110
              $region129: #{up2_forward.3} parent=123 // loop_footer
                %s1061 = sadd.s32 1, %s1057
              $region130: #{up2_forward.3} parent=123 // loop_footer_branch
                %1056 = sbr.rel target = $region126
              $region131: #{up2_forward.3} parent=123 // loop_exit
                _
            $region124: #{up2_forward.3} parent=115 // pred_fallthru
              _
          $region116: #{up2_forward.3} parent=111 // pred_fallthru
            _
          %1172 = vnop
        $region112: #{up2_forward.3} parent=95 // pred_fallthru
          _
      $region96: #{up2_forward.3} parent=5 // pred_fallthru
        _
      %p1173 = scmp.le.s32.totalorder 2, %s8
      // Predicated region
      $region147: #{up2_forward.3} parent=5 // pred_check
        %p1174 = pneg %p1173
      $region148: #{up2_forward.3} parent=5 // pred_check_branch
        %1176 = sbr.rel (%p1174) target = $region150
      $region149: #{up2_forward.3} parent=5 // pred_region
        %s1177 = ssub.s32 %s8, 2
        // Predicated region
        $region151: #{up2_forward.3} parent=149 // pred_check
          %p1178 = pneg %p115
        $region152: #{up2_forward.3} parent=149 // pred_check_branch
          %1180 = sbr.rel (%p1178) target = $region154
        $region153: #{up2_forward.3} parent=149 // pred_region
          %s1181 = sand.u32 %s100, 1
          %s1182 = sand.u32 %s100, 1
          %s1183 = smul.addr %s1182, 192
          %s1184 = scalar_lea.vmem [#allocation4], %s1183
        $region154: #{up2_forward.3} parent=149 // pred_fallthru
          _
      $region150: #{up2_forward.3} parent=5 // pred_fallthru
        _
    $region6: #{up2_forward.3} parent=1 // loop_footer
      %s12 = sadd.s32 1, %s8
    $region7: #{up2_forward.3} parent=1 // loop_footer_branch
      %7 = sbr.rel target = $region3
    $region8: #{up2_forward.3} parent=1 // loop_exit
      _

</llo_original>
